<compile_context>
chip_gen: v6e
topology: v6e:2x2x1
jax: 0.10.0
libtpu: 0.0.40
codegen_flags: <defaults>
</compile_context>

<pallas_src>
import functools

import jax
import jax.numpy as jnp
import numpy as np
from jax.experimental import pallas as pl
from jax.experimental.pallas import tpu as pltpu


# ----------------------------- in-kernel helpers -----------------------------

def _mish(v):
    # mish(x) = x * tanh(softplus(x)) = x * n / (n + 2), n = u*(u+2), u = e^x.
    # Clamp the exp argument: for v > 20 the ratio is already 1.0 in f32.
    # The divide is replaced by the EUP approximate reciprocal (frees VALU).
    u = jnp.exp(jnp.minimum(v, 20.0))
    n = u * (u + 2.0)
    return v * n * pl.reciprocal(n + 2.0, approx=True)


def _shift_t(x, d):
    """out[:, t, :] = x[:, t + d, :], zero outside [0, T). d is a static int."""
    if d == 0:
        return x
    Bt, T, C = x.shape
    z = jnp.zeros((Bt, abs(d), C), x.dtype)
    if d > 0:
        return jnp.concatenate([x[:, d:, :], z], axis=1)
    return jnp.concatenate([z, x[:, :T + d, :]], axis=1)


def _conv1d_same(x, w_ref, bias, K, pad, mm_dtype):
    """'same' cross-correlation Conv1d as K accumulating matmuls.

    x     : (Bt, T, C_in) f32 activations (channels on lanes)
    w_ref : (K, C_in, C_out) mm_dtype weights (per-tap slices)
    bias  : (1, C_out) f32
    """
    Bt, T, Cin = x.shape
    Cout = w_ref.shape[2]
    acc = None
    for k in range(K):
        tap = _shift_t(x, k - pad).astype(mm_dtype).reshape(Bt * T, Cin)
        y = jnp.dot(tap, w_ref[k], preferred_element_type=jnp.float32)
        acc = y if acc is None else acc + y
    return acc.reshape(Bt, T, Cout) + bias


def _group_norm(h, m_cg, m_gc, gamma, beta, inv_n, eps=1e-5):
    """One-pass GroupNorm over (channels-in-group, T) per batch row.

    h     : (Bt, T, C) f32.  var = E[h^2] - mean^2, f32 accumulation.
    m_cg  : (C, G) one-hot group membership, m_gc = m_cg.T : (G, C)
    gamma, beta : (1, C);  inv_n = 1 / (channels_per_group * T)
    """
    Bt = h.shape[0]
    s = jnp.sum(h, axis=1)                                              # (Bt, C)
    ss = jnp.sum(h * h, axis=1)                                         # (Bt, C)
    st = jnp.concatenate([s, ss], axis=0)                               # (2Bt, C)
    g = jnp.dot(st, m_cg, preferred_element_type=jnp.float32)           # (2Bt, G)
    gb = jnp.dot(g, m_gc, preferred_element_type=jnp.float32) * inv_n   # (2Bt, C)
    mean, ex2 = gb[:Bt], gb[Bt:]
    var = ex2 - mean * mean
    a = jax.lax.rsqrt(var + eps) * gamma                                # (Bt, C)
    b = beta - mean * a
    return h * a[:, None, :] + b[:, None, :]


# --------------------------------- kernel ------------------------------------

def _make_kernel(K, pad, inv_n, mm_dtype):
    def kernel(x_ref, scale_ref, fbias_ref,
               w1_ref, w2_ref, wr_ref, pv_ref, mcg_ref, mgc_ref,
               out_ref):
        x = x_ref[...]                                   # (Bt, T, C_in) f32
        Bt, T, Cin = x.shape
        Cout = out_ref.shape[-1]

        # Packed per-channel parameters, each (1, C_out).
        b1, g1, be1 = pv_ref[0:1, :], pv_ref[1:2, :], pv_ref[2:3, :]
        b2, g2, be2 = pv_ref[3:4, :], pv_ref[4:5, :], pv_ref[5:6, :]
        br = pv_ref[6:7, :]
        mcg, mgc = mcg_ref[...], mgc_ref[...]

        # ---- block 0: Conv1d -> GroupNorm -> Mish
        h = _conv1d_same(x, w1_ref, b1, K, pad, mm_dtype)
        h = _group_norm(h, mcg, mgc, g1, be1, inv_n)
        h = _mish(h)

        # ---- FiLM (cond encoder hoisted to wrapper): per-batch scale & bias
        h = scale_ref[...] * h + fbias_ref[...]          # (Bt,1,C) broadcast

        # ---- block 1: Conv1d -> GroupNorm -> Mish
        h = _conv1d_same(h, w2_ref, b2, K, pad, mm_dtype)
        h = _group_norm(h, mcg, mgc, g2, be2, inv_n)
        h = _mish(h)

        # ---- residual 1x1 conv
        res = jnp.dot(x.astype(mm_dtype).reshape(Bt * T, Cin), wr_ref[...],
                      preferred_element_type=jnp.float32).reshape(Bt, T, Cout)
        out_ref[...] = (h + res + br).astype(out_ref.dtype)

    return kernel


# ------------------------------ tuning helpers --------------------------------

def _device_kind():
    try:
        return jax.devices()[0].device_kind.lower()
    except Exception:
        return ""


def _pick_b_tile(B, T, b_tile_max):
    kind = _device_kind()
    if b_tile_max is None:
        # target M = b_tile*T rows per matmul: 128 fills v5e's MXU, 256 v6e/v7x.
        narrow_mxu = any(v in kind for v in ("v2", "v3", "v4", "v5"))
        target_m = 128 if narrow_mxu else 256
        b_tile_max = max(1, target_m // max(T, 1))
    # v7x has 2 TensorCores per chip: keep >= 2 "parallel" grid steps.
    if "7" in kind and B >= 2:
        b_tile_max = max(1, min(b_tile_max, B // 2))
    b_tile = max(1, min(b_tile_max, B))
    while B % b_tile:
        b_tile -= 1
    return b_tile


def _vmem_limit_bytes():
    try:
        cap = int(pltpu.get_tpu_info().vmem_capacity_bytes)
    except Exception:
        cap = 64 * 1024 * 1024            # conservative: v7x physical VMEM
    # leave headroom for Mosaic-internal scratch; cap well under 128 MiB.
    return min(cap * 3 // 4, 100 * 1024 * 1024)


# --------------------------------- wrapper ------------------------------------

def conditional_residual_block1d(x, cond, params, *, n_groups, kernel_size,
                                 b_tile_max=None, matmul_dtype=jnp.bfloat16):
    """x: (B, C_in, T) f32, cond: (B, cond_dim) f32 -> (B, C_out, T) f32."""
    B, c_in, T = x.shape
    K = kernel_size
    pad = K // 2
    p = {k: jnp.asarray(v, jnp.float32) for k, v in params.items()}
    c_out = p["w1"].shape[0]
    cpg = c_out // n_groups

    # ---------------- glue (plain XLA) ----------------
    # channels-last layout so C sits on lanes inside the kernel
    x_t = jnp.transpose(x.astype(jnp.float32), (0, 2, 1))        # (B, T, C_in)

    # FiLM cond encoder hoisted: one (B, D) x (D, 2*C_out) matmul for all B.
    cm = _mish_jax(cond.astype(jnp.float32))
    embed = cm @ p["wc"].T + p["bc"]                             # (B, 2*C_out)
    scale3 = embed[:, :c_out][:, None, :]                        # (B, 1, C_out)
    fbias3 = embed[:, c_out:][:, None, :]                        # (B, 1, C_out)

    # conv weights as per-tap slices (K, C_in, C_out), stored in matmul dtype
    w1f = jnp.transpose(p["w1"], (2, 1, 0)).astype(matmul_dtype)
    w2f = jnp.transpose(p["w2"], (2, 1, 0)).astype(matmul_dtype)
    if "wr" in p:                                   # in_ch != out_ch: 1x1 conv
        wrk = jnp.transpose(p["wr"][:, :, 0]).astype(matmul_dtype)
        br = p["br"]
    else:                                           # nn.Identity residual path
        assert c_in == c_out, "identity residual requires in_ch == out_ch"
        wrk = jnp.eye(c_out, dtype=matmul_dtype)
        br = jnp.zeros((c_out,), jnp.float32)
        # TODO(synk): skip the identity matmul entirely for the in==out case.

    # pack the 7 per-channel vectors into a single lane-dense (8, C_out) block
    pvec = jnp.stack([p["b1"], p["g1"], p["be1"],
                      p["b2"], p["g2"], p["be2"],
                      br, jnp.zeros((c_out,), jnp.float32)], axis=0)

    # one-hot group membership for the GroupNorm group-reduce / broadcast-back
    gid = jnp.arange(c_out) // cpg
    m_cg = (gid[:, None] == jnp.arange(n_groups)[None, :]).astype(jnp.float32)
    m_gc = m_cg.T
    inv_n = 1.0 / float(cpg * T)

    b_tile = _pick_b_tile(B, T, b_tile_max)
    grid = (B // b_tile,)

    kernel = _make_kernel(K, pad, inv_n, matmul_dtype)

    def const_spec(shape):
        n = len(shape)
        # TODO(synk): on v7x with production channel counts, single-buffer these
        # constant-index blocks (pipeline_mode=pl.Buffered(1)) to halve resident
        # weight VMEM; bf16 weights already halve it vs f32.
        return pl.BlockSpec(shape, lambda b, _n=n: (0,) * _n)

    itemsize = jnp.dtype(matmul_dtype).itemsize
    mm_flops = 2 * B * T * (K * c_in + K * c_out + c_in) * c_out
    gn_flops = 2 * (2 * B) * c_out * n_groups * 2 * 2
    ew_flops = 30 * B * T * c_out
    cost = pl.CostEstimate(
        flops=int(mm_flops + gn_flops + ew_flops),
        transcendentals=int(4 * B * T * c_out),
        bytes_accessed=int(4 * (B * T * c_in + B * T * c_out + 2 * B * c_out
                                + pvec.size + m_cg.size + m_gc.size)
                           + itemsize * (w1f.size + w2f.size + wrk.size)))

    out_t = pl.pallas_call(
        kernel,
        out_shape=jax.ShapeDtypeStruct((B, T, c_out), jnp.float32),
        grid=grid,
        in_specs=[
            pl.BlockSpec((b_tile, T, c_in), lambda b: (b, 0, 0)),    # x (B,T,Cin)
            pl.BlockSpec((b_tile, 1, c_out), lambda b: (b, 0, 0)),   # FiLM scale
            pl.BlockSpec((b_tile, 1, c_out), lambda b: (b, 0, 0)),   # FiLM bias
            const_spec(w1f.shape),                                   # conv1 taps
            const_spec(w2f.shape),                                   # conv2 taps
            const_spec(wrk.shape),                                   # residual w
            const_spec(pvec.shape),                                  # packed vecs
            const_spec(m_cg.shape),                                  # (C, G)
            const_spec(m_gc.shape),                                  # (G, C)
        ],
        out_specs=pl.BlockSpec((b_tile, T, c_out), lambda b: (b, 0, 0)),
        compiler_params=pltpu.CompilerParams(
            dimension_semantics=("parallel",),
            vmem_limit_bytes=_vmem_limit_bytes()),
        cost_estimate=cost,
    )(x_t, scale3, fbias3, w1f, w2f, wrk, pvec, m_cg, m_gc)

    return jnp.transpose(out_t, (0, 2, 1))                          # (B, C_out, T)


# ---------------------------- pure-JAX reference ------------------------------

def _mish_jax(v):
    return v * jnp.tanh(jnp.log1p(jnp.exp(v)))


def _ref_conv1d(x, w, b, pad):
    y = jax.lax.conv_general_dilated(
        x, w, window_strides=(1,), padding=[(pad, pad)],
        dimension_numbers=("NCH", "OIH", "NCH"))
    return y + b[None, :, None]


def _ref_group_norm(h, G, gamma, beta, eps=1e-5):
    B, C, T = h.shape
    hg = h.reshape(B, G, (C // G) * T)
    mean = hg.mean(-1, keepdims=True)
    var = hg.var(-1, keepdims=True)
    hn = ((hg - mean) / jnp.sqrt(var + eps)).reshape(B, C, T)
    return hn * gamma[None, :, None] + beta[None, :, None]


def _reference(x, cond, p, n_groups, kernel_size, c_out):
    pad = kernel_size // 2
    h = _ref_conv1d(x, p["w1"], p["b1"], pad)
    h = _mish_jax(_ref_group_norm(h, n_groups, p["g1"], p["be1"]))
    embed = _mish_jax(cond) @ p["wc"].T + p["bc"]          # (B, 2*C_out)
    scale = embed[:, :c_out][:, :, None]
    bias = embed[:, c_out:][:, :, None]
    h = scale * h + bias
    h = _ref_conv1d(h, p["w2"], p["b2"], pad)
    h = _mish_jax(_ref_group_norm(h, n_groups, p["g2"], p["be2"]))
    res = jnp.einsum("oc,bct->bot", p["wr"][:, :, 0], x) + p["br"][None, :, None]
    return h + res


# ----------------------------------- main -------------------------------------

if __name__ == "__main__":
    B, C_IN, C_OUT, T = 2, 4, 8, 16
    COND_DIM, K, N_GROUPS = 8, 3, 4
    COND_CHANNELS = 2 * C_OUT   # cond_predict_scale=True

    key = jax.random.PRNGKey(0)
    ks = jax.random.split(key, 12)
    f32 = jnp.float32

    params = {
        "w1": 0.2 * jax.random.normal(ks[0], (C_OUT, C_IN, K), f32),
        "b1": 0.1 * jax.random.normal(ks[1], (C_OUT,), f32),
        "g1": jnp.ones((C_OUT,), f32) + 0.1 * jax.random.normal(ks[2], (C_OUT,), f32),
        "be1": 0.1 * jax.random.normal(ks[3], (C_OUT,), f32),
        "wc": 0.2 * jax.random.normal(ks[4], (COND_CHANNELS, COND_DIM), f32),
        "bc": 0.1 * jax.random.normal(ks[5], (COND_CHANNELS,), f32),
        "w2": 0.2 * jax.random.normal(ks[6], (C_OUT, C_OUT, K), f32),
        "b2": 0.1 * jax.random.normal(ks[7], (C_OUT,), f32),
        "g2": jnp.ones((C_OUT,), f32),
        "be2": jnp.zeros((C_OUT,), f32),
        "wr": 0.2 * jax.random.normal(ks[8], (C_OUT, C_IN, 1), f32),
        "br": 0.1 * jax.random.normal(ks[9], (C_OUT,), f32),
    }

    x = jax.random.normal(ks[10], (B, C_IN, T), f32)
    cond = jax.random.normal(ks[11], (B, COND_DIM), f32)

    run = functools.partial(conditional_residual_block1d,
                            n_groups=N_GROUPS, kernel_size=K)
    out = jax.block_until_ready(run(x, cond, params))

    ref = jax.block_until_ready(
        _reference(x, cond, params, N_GROUPS, K, C_OUT))

    # Tolerance covers bf16 matmul inputs (f32 accumulation) and the EUP
    # approximate reciprocal in Mish — the production-precision configuration.
    np.testing.assert_allclose(np.asarray(out), np.asarray(ref),
                               rtol=5e-2, atol=5e-2)
    print("KERNEL_OK")
</pallas_src>

<mosaic_0001>
module attributes {stable_mosaic.version = 11 : i64} {
  func.func @kernel(%arg0: i32, %arg1: memref<2x16x4xf32, #tpu.memory_space<vmem>>, %arg2: memref<2x1x8xf32, #tpu.memory_space<vmem>>, %arg3: memref<2x1x8xf32, #tpu.memory_space<vmem>>, %arg4: memref<3x4x8xbf16, #tpu.memory_space<vmem>>, %arg5: memref<3x8x8xbf16, #tpu.memory_space<vmem>>, %arg6: memref<4x8xbf16, #tpu.memory_space<vmem>>, %arg7: memref<8x8xf32, #tpu.memory_space<vmem>>, %arg8: memref<8x4xf32, #tpu.memory_space<vmem>>, %arg9: memref<4x8xf32, #tpu.memory_space<vmem>>, %arg10: memref<2x16x8xf32, #tpu.memory_space<vmem>>) attributes {dimension_semantics = [#tpu.dimension_semantics<parallel>], iteration_bounds = array<i64: 1>, scalar_prefetch = 0 : i64, scratch_operands = 0 : i64, tpu.core_type = #tpu.core_type<tc>, window_params = [{transform_indices = @transform_0, window_bounds = array<i64: 2, 16, 4>}, {transform_indices = @transform_1, window_bounds = array<i64: 2, 1, 8>}, {transform_indices = @transform_2, window_bounds = array<i64: 2, 1, 8>}, {pipeline_mode = #tpu.pipeline_mode<synchronous>, transform_indices = @transform_3, window_bounds = array<i64: 3, 4, 8>}, {pipeline_mode = #tpu.pipeline_mode<synchronous>, transform_indices = @transform_4, window_bounds = array<i64: 3, 8, 8>}, {pipeline_mode = #tpu.pipeline_mode<synchronous>, transform_indices = @transform_5, window_bounds = array<i64: 4, 8>}, {pipeline_mode = #tpu.pipeline_mode<synchronous>, transform_indices = @transform_6, window_bounds = array<i64: 8, 8>}, {pipeline_mode = #tpu.pipeline_mode<synchronous>, transform_indices = @transform_7, window_bounds = array<i64: 8, 4>}, {pipeline_mode = #tpu.pipeline_mode<synchronous>, transform_indices = @transform_8, window_bounds = array<i64: 4, 8>}, {transform_indices = @transform_9, window_bounds = array<i64: 2, 16, 8>}]} {
    %c0 = arith.constant 0 : index
    %c0_0 = arith.constant 0 : index
    %c0_1 = arith.constant 0 : index
    %0 = vector.load %arg1[%c0, %c0_0, %c0_1] : memref<2x16x4xf32, #tpu.memory_space<vmem>>, vector<2x16x4xf32>
    %c0_2 = arith.constant 0 : index
    %c0_3 = arith.constant 0 : index
    %1 = vector.load %arg7[%c0_2, %c0_3] : memref<8x8xf32, #tpu.memory_space<vmem>>, vector<1x8xf32>
    %c1 = arith.constant 1 : index
    %c0_4 = arith.constant 0 : index
    %2 = vector.load %arg7[%c1, %c0_4] : memref<8x8xf32, #tpu.memory_space<vmem>>, vector<1x8xf32>
    %c2 = arith.constant 2 : index
    %c0_5 = arith.constant 0 : index
    %3 = vector.load %arg7[%c2, %c0_5] : memref<8x8xf32, #tpu.memory_space<vmem>>, vector<1x8xf32>
    %c3 = arith.constant 3 : index
    %c0_6 = arith.constant 0 : index
    %4 = vector.load %arg7[%c3, %c0_6] : memref<8x8xf32, #tpu.memory_space<vmem>>, vector<1x8xf32>
    %c4 = arith.constant 4 : index
    %c0_7 = arith.constant 0 : index
    %5 = vector.load %arg7[%c4, %c0_7] : memref<8x8xf32, #tpu.memory_space<vmem>>, vector<1x8xf32>
    %c5 = arith.constant 5 : index
    %c0_8 = arith.constant 0 : index
    %6 = vector.load %arg7[%c5, %c0_8] : memref<8x8xf32, #tpu.memory_space<vmem>>, vector<1x8xf32>
    %c6 = arith.constant 6 : index
    %c0_9 = arith.constant 0 : index
    %7 = vector.load %arg7[%c6, %c0_9] : memref<8x8xf32, #tpu.memory_space<vmem>>, vector<1x8xf32>
    %c0_10 = arith.constant 0 : index
    %c0_11 = arith.constant 0 : index
    %8 = vector.load %arg8[%c0_10, %c0_11] : memref<8x4xf32, #tpu.memory_space<vmem>>, vector<8x4xf32>
    %c0_12 = arith.constant 0 : index
    %c0_13 = arith.constant 0 : index
    %9 = vector.load %arg9[%c0_12, %c0_13] : memref<4x8xf32, #tpu.memory_space<vmem>>, vector<4x8xf32>
    %cst = arith.constant 0.000000e+00 : f32
    %10 = vector.broadcast %cst : f32 to vector<2x1x4xf32>
    %11 = vector.extract_strided_slice %0 {offsets = [0, 0, 0], sizes = [2, 15, 4], strides = [1, 1, 1]} : vector<2x16x4xf32> to vector<2x15x4xf32>
    %12 = tpu.concatenate %10, %11 in 1 : vector<2x1x4xf32>, vector<2x15x4xf32> -> vector<2x16x4xf32>
    %13 = arith.truncf %12 : vector<2x16x4xf32> to vector<2x16x4xbf16>
    %14 = vector.shape_cast %13 : vector<2x16x4xbf16> to vector<32x4xbf16>
    %c0_14 = arith.constant 0 : index
    %c0_15 = arith.constant 0 : index
    %c0_16 = arith.constant 0 : index
    %15 = vector.load %arg4[%c0_14, %c0_15, %c0_16] : memref<3x4x8xbf16, #tpu.memory_space<vmem>>, vector<1x4x8xbf16>
    %16 = vector.shape_cast %15 : vector<1x4x8xbf16> to vector<4x8xbf16>
    %cst_17 = arith.constant dense<0.000000e+00> : vector<32x8xf32>
    %17 = tpu.matmul %14, %16, %cst_17 {dimension_numbers = #tpu.dot_dimension_numbers<[1], [0], [0], [1], [0, 0, 1, 1], [], []>} : vector<32x4xbf16>, vector<4x8xbf16>, vector<32x8xf32> -> vector<32x8xf32>
    %18 = arith.truncf %0 : vector<2x16x4xf32> to vector<2x16x4xbf16>
    %19 = vector.shape_cast %18 : vector<2x16x4xbf16> to vector<32x4xbf16>
    %c1_18 = arith.constant 1 : index
    %c0_19 = arith.constant 0 : index
    %c0_20 = arith.constant 0 : index
    %20 = vector.load %arg4[%c1_18, %c0_19, %c0_20] : memref<3x4x8xbf16, #tpu.memory_space<vmem>>, vector<1x4x8xbf16>
    %21 = vector.shape_cast %20 : vector<1x4x8xbf16> to vector<4x8xbf16>
    %cst_21 = arith.constant dense<0.000000e+00> : vector<32x8xf32>
    %22 = tpu.matmul %19, %21, %cst_21 {dimension_numbers = #tpu.dot_dimension_numbers<[1], [0], [0], [1], [0, 0, 1, 1], [], []>} : vector<32x4xbf16>, vector<4x8xbf16>, vector<32x8xf32> -> vector<32x8xf32>
    %23 = arith.addf %17, %22 : vector<32x8xf32>
    %cst_22 = arith.constant 0.000000e+00 : f32
    %24 = vector.broadcast %cst_22 : f32 to vector<2x1x4xf32>
    %25 = vector.extract_strided_slice %0 {offsets = [0, 1, 0], sizes = [2, 15, 4], strides = [1, 1, 1]} : vector<2x16x4xf32> to vector<2x15x4xf32>
    %26 = tpu.concatenate %25, %24 in 1 : vector<2x15x4xf32>, vector<2x1x4xf32> -> vector<2x16x4xf32>
    %27 = arith.truncf %26 : vector<2x16x4xf32> to vector<2x16x4xbf16>
    %28 = vector.shape_cast %27 : vector<2x16x4xbf16> to vector<32x4xbf16>
    %c2_23 = arith.constant 2 : index
    %c0_24 = arith.constant 0 : index
    %c0_25 = arith.constant 0 : index
    %29 = vector.load %arg4[%c2_23, %c0_24, %c0_25] : memref<3x4x8xbf16, #tpu.memory_space<vmem>>, vector<1x4x8xbf16>
    %30 = vector.shape_cast %29 : vector<1x4x8xbf16> to vector<4x8xbf16>
    %cst_26 = arith.constant dense<0.000000e+00> : vector<32x8xf32>
    %31 = tpu.matmul %28, %30, %cst_26 {dimension_numbers = #tpu.dot_dimension_numbers<[1], [0], [0], [1], [0, 0, 1, 1], [], []>} : vector<32x4xbf16>, vector<4x8xbf16>, vector<32x8xf32> -> vector<32x8xf32>
    %32 = arith.addf %23, %31 : vector<32x8xf32>
    %33 = vector.shape_cast %32 : vector<32x8xf32> to vector<2x16x8xf32>
    %34 = vector.shape_cast %1 : vector<1x8xf32> to vector<1x1x8xf32>
    %35 = vector.broadcast %34 : vector<1x1x8xf32> to vector<2x16x8xf32>
    %36 = arith.addf %33, %35 : vector<2x16x8xf32>
    %cst_27 = arith.constant dense<0.000000e+00> : vector<2x8xf32>
    %37 = vector.multi_reduction <add>, %36, %cst_27 [1] : vector<2x16x8xf32> to vector<2x8xf32>
    %38 = arith.mulf %36, %36 : vector<2x16x8xf32>
    %cst_28 = arith.constant dense<0.000000e+00> : vector<2x8xf32>
    %39 = vector.multi_reduction <add>, %38, %cst_28 [1] : vector<2x16x8xf32> to vector<2x8xf32>
    %40 = tpu.concatenate %37, %39 in 0 : vector<2x8xf32>, vector<2x8xf32> -> vector<4x8xf32>
    %cst_29 = arith.constant dense<0.000000e+00> : vector<4x4xf32>
    %41 = tpu.matmul %40, %8, %cst_29 {dimension_numbers = #tpu.dot_dimension_numbers<[1], [0], [0], [1], [0, 0, 1, 1], [], []>} : vector<4x8xf32>, vector<8x4xf32>, vector<4x4xf32> -> vector<4x4xf32>
    %cst_30 = arith.constant dense<0.000000e+00> : vector<4x8xf32>
    %42 = tpu.matmul %41, %9, %cst_30 {dimension_numbers = #tpu.dot_dimension_numbers<[1], [0], [0], [1], [0, 0, 1, 1], [], []>} : vector<4x4xf32>, vector<4x8xf32>, vector<4x8xf32> -> vector<4x8xf32>
    %cst_31 = arith.constant 3.125000e-02 : f32
    %43 = vector.broadcast %cst_31 : f32 to vector<4x8xf32>
    %44 = arith.mulf %42, %43 : vector<4x8xf32>
    %45 = vector.extract_strided_slice %44 {offsets = [0, 0], sizes = [2, 8], strides = [1, 1]} : vector<4x8xf32> to vector<2x8xf32>
    %46 = vector.extract_strided_slice %44 {offsets = [2, 0], sizes = [2, 8], strides = [1, 1]} : vector<4x8xf32> to vector<2x8xf32>
    %47 = arith.mulf %45, %45 : vector<2x8xf32>
    %48 = arith.subf %46, %47 : vector<2x8xf32>
    %cst_32 = arith.constant 9.99999974E-6 : f32
    %49 = vector.broadcast %cst_32 : f32 to vector<2x8xf32>
    %50 = arith.addf %48, %49 : vector<2x8xf32>
    %51 = math.rsqrt %50 : vector<2x8xf32>
    %52 = vector.broadcast %2 : vector<1x8xf32> to vector<2x8xf32>
    %53 = arith.mulf %51, %52 : vector<2x8xf32>
    %54 = arith.mulf %45, %53 : vector<2x8xf32>
    %55 = vector.broadcast %3 : vector<1x8xf32> to vector<2x8xf32>
    %56 = arith.subf %55, %54 : vector<2x8xf32>
    %57 = vector.shape_cast %53 : vector<2x8xf32> to vector<2x1x8xf32>
    %58 = vector.broadcast %57 : vector<2x1x8xf32> to vector<2x16x8xf32>
    %59 = arith.mulf %36, %58 : vector<2x16x8xf32>
    %60 = vector.shape_cast %56 : vector<2x8xf32> to vector<2x1x8xf32>
    %61 = vector.broadcast %60 : vector<2x1x8xf32> to vector<2x16x8xf32>
    %62 = arith.addf %59, %61 : vector<2x16x8xf32>
    %cst_33 = arith.constant 2.000000e+01 : f32
    %63 = vector.broadcast %cst_33 : f32 to vector<2x16x8xf32>
    %64 = arith.minimumf %62, %63 : vector<2x16x8xf32>
    %65 = math.exp %64 : vector<2x16x8xf32>
    %cst_34 = arith.constant 2.000000e+00 : f32
    %66 = vector.broadcast %cst_34 : f32 to vector<2x16x8xf32>
    %67 = arith.addf %65, %66 : vector<2x16x8xf32>
    %68 = arith.mulf %65, %67 : vector<2x16x8xf32>
    %69 = arith.mulf %62, %68 : vector<2x16x8xf32>
    %cst_35 = arith.constant 2.000000e+00 : f32
    %70 = vector.broadcast %cst_35 : f32 to vector<2x16x8xf32>
    %71 = arith.addf %68, %70 : vector<2x16x8xf32>
    %72 = tpu.reciprocal %71 {approx = true} : vector<2x16x8xf32> -> vector<2x16x8xf32>
    %73 = arith.mulf %69, %72 : vector<2x16x8xf32>
    %c0_36 = arith.constant 0 : index
    %c0_37 = arith.constant 0 : index
    %c0_38 = arith.constant 0 : index
    %74 = vector.load %arg2[%c0_36, %c0_37, %c0_38] : memref<2x1x8xf32, #tpu.memory_space<vmem>>, vector<2x1x8xf32>
    %75 = vector.broadcast %74 : vector<2x1x8xf32> to vector<2x16x8xf32>
    %76 = arith.mulf %75, %73 : vector<2x16x8xf32>
    %c0_39 = arith.constant 0 : index
    %c0_40 = arith.constant 0 : index
    %c0_41 = arith.constant 0 : index
    %77 = vector.load %arg3[%c0_39, %c0_40, %c0_41] : memref<2x1x8xf32, #tpu.memory_space<vmem>>, vector<2x1x8xf32>
    %78 = vector.broadcast %77 : vector<2x1x8xf32> to vector<2x16x8xf32>
    %79 = arith.addf %76, %78 : vector<2x16x8xf32>
    %cst_42 = arith.constant 0.000000e+00 : f32
    %80 = vector.broadcast %cst_42 : f32 to vector<2x1x8xf32>
    %81 = vector.extract_strided_slice %79 {offsets = [0, 0, 0], sizes = [2, 15, 8], strides = [1, 1, 1]} : vector<2x16x8xf32> to vector<2x15x8xf32>
    %82 = tpu.concatenate %80, %81 in 1 : vector<2x1x8xf32>, vector<2x15x8xf32> -> vector<2x16x8xf32>
    %83 = arith.truncf %82 : vector<2x16x8xf32> to vector<2x16x8xbf16>
    %84 = vector.shape_cast %83 : vector<2x16x8xbf16> to vector<32x8xbf16>
    %c0_43 = arith.constant 0 : index
    %c0_44 = arith.constant 0 : index
    %c0_45 = arith.constant 0 : index
    %85 = vector.load %arg5[%c0_43, %c0_44, %c0_45] : memref<3x8x8xbf16, #tpu.memory_space<vmem>>, vector<1x8x8xbf16>
    %86 = vector.shape_cast %85 : vector<1x8x8xbf16> to vector<8x8xbf16>
    %cst_46 = arith.constant dense<0.000000e+00> : vector<32x8xf32>
    %87 = tpu.matmul %84, %86, %cst_46 {dimension_numbers = #tpu.dot_dimension_numbers<[1], [0], [0], [1], [0, 0, 1, 1], [], []>} : vector<32x8xbf16>, vector<8x8xbf16>, vector<32x8xf32> -> vector<32x8xf32>
    %88 = arith.truncf %79 : vector<2x16x8xf32> to vector<2x16x8xbf16>
    %89 = vector.shape_cast %88 : vector<2x16x8xbf16> to vector<32x8xbf16>
    %c1_47 = arith.constant 1 : index
    %c0_48 = arith.constant 0 : index
    %c0_49 = arith.constant 0 : index
    %90 = vector.load %arg5[%c1_47, %c0_48, %c0_49] : memref<3x8x8xbf16, #tpu.memory_space<vmem>>, vector<1x8x8xbf16>
    %91 = vector.shape_cast %90 : vector<1x8x8xbf16> to vector<8x8xbf16>
    %cst_50 = arith.constant dense<0.000000e+00> : vector<32x8xf32>
    %92 = tpu.matmul %89, %91, %cst_50 {dimension_numbers = #tpu.dot_dimension_numbers<[1], [0], [0], [1], [0, 0, 1, 1], [], []>} : vector<32x8xbf16>, vector<8x8xbf16>, vector<32x8xf32> -> vector<32x8xf32>
    %93 = arith.addf %87, %92 : vector<32x8xf32>
    %cst_51 = arith.constant 0.000000e+00 : f32
    %94 = vector.broadcast %cst_51 : f32 to vector<2x1x8xf32>
    %95 = vector.extract_strided_slice %79 {offsets = [0, 1, 0], sizes = [2, 15, 8], strides = [1, 1, 1]} : vector<2x16x8xf32> to vector<2x15x8xf32>
    %96 = tpu.concatenate %95, %94 in 1 : vector<2x15x8xf32>, vector<2x1x8xf32> -> vector<2x16x8xf32>
    %97 = arith.truncf %96 : vector<2x16x8xf32> to vector<2x16x8xbf16>
    %98 = vector.shape_cast %97 : vector<2x16x8xbf16> to vector<32x8xbf16>
    %c2_52 = arith.constant 2 : index
    %c0_53 = arith.constant 0 : index
    %c0_54 = arith.constant 0 : index
    %99 = vector.load %arg5[%c2_52, %c0_53, %c0_54] : memref<3x8x8xbf16, #tpu.memory_space<vmem>>, vector<1x8x8xbf16>
    %100 = vector.shape_cast %99 : vector<1x8x8xbf16> to vector<8x8xbf16>
    %cst_55 = arith.constant dense<0.000000e+00> : vector<32x8xf32>
    %101 = tpu.matmul %98, %100, %cst_55 {dimension_numbers = #tpu.dot_dimension_numbers<[1], [0], [0], [1], [0, 0, 1, 1], [], []>} : vector<32x8xbf16>, vector<8x8xbf16>, vector<32x8xf32> -> vector<32x8xf32>
    %102 = arith.addf %93, %101 : vector<32x8xf32>
    %103 = vector.shape_cast %102 : vector<32x8xf32> to vector<2x16x8xf32>
    %104 = vector.shape_cast %4 : vector<1x8xf32> to vector<1x1x8xf32>
    %105 = vector.broadcast %104 : vector<1x1x8xf32> to vector<2x16x8xf32>
    %106 = arith.addf %103, %105 : vector<2x16x8xf32>
    %cst_56 = arith.constant dense<0.000000e+00> : vector<2x8xf32>
    %107 = vector.multi_reduction <add>, %106, %cst_56 [1] : vector<2x16x8xf32> to vector<2x8xf32>
    %108 = arith.mulf %106, %106 : vector<2x16x8xf32>
    %cst_57 = arith.constant dense<0.000000e+00> : vector<2x8xf32>
    %109 = vector.multi_reduction <add>, %108, %cst_57 [1] : vector<2x16x8xf32> to vector<2x8xf32>
    %110 = tpu.concatenate %107, %109 in 0 : vector<2x8xf32>, vector<2x8xf32> -> vector<4x8xf32>
    %cst_58 = arith.constant dense<0.000000e+00> : vector<4x4xf32>
    %111 = tpu.matmul %110, %8, %cst_58 {dimension_numbers = #tpu.dot_dimension_numbers<[1], [0], [0], [1], [0, 0, 1, 1], [], []>} : vector<4x8xf32>, vector<8x4xf32>, vector<4x4xf32> -> vector<4x4xf32>
    %cst_59 = arith.constant dense<0.000000e+00> : vector<4x8xf32>
    %112 = tpu.matmul %111, %9, %cst_59 {dimension_numbers = #tpu.dot_dimension_numbers<[1], [0], [0], [1], [0, 0, 1, 1], [], []>} : vector<4x4xf32>, vector<4x8xf32>, vector<4x8xf32> -> vector<4x8xf32>
    %cst_60 = arith.constant 3.125000e-02 : f32
    %113 = vector.broadcast %cst_60 : f32 to vector<4x8xf32>
    %114 = arith.mulf %112, %113 : vector<4x8xf32>
    %115 = vector.extract_strided_slice %114 {offsets = [0, 0], sizes = [2, 8], strides = [1, 1]} : vector<4x8xf32> to vector<2x8xf32>
    %116 = vector.extract_strided_slice %114 {offsets = [2, 0], sizes = [2, 8], strides = [1, 1]} : vector<4x8xf32> to vector<2x8xf32>
    %117 = arith.mulf %115, %115 : vector<2x8xf32>
    %118 = arith.subf %116, %117 : vector<2x8xf32>
    %cst_61 = arith.constant 9.99999974E-6 : f32
    %119 = vector.broadcast %cst_61 : f32 to vector<2x8xf32>
    %120 = arith.addf %118, %119 : vector<2x8xf32>
    %121 = math.rsqrt %120 : vector<2x8xf32>
    %122 = vector.broadcast %5 : vector<1x8xf32> to vector<2x8xf32>
    %123 = arith.mulf %121, %122 : vector<2x8xf32>
    %124 = arith.mulf %115, %123 : vector<2x8xf32>
    %125 = vector.broadcast %6 : vector<1x8xf32> to vector<2x8xf32>
    %126 = arith.subf %125, %124 : vector<2x8xf32>
    %127 = vector.shape_cast %123 : vector<2x8xf32> to vector<2x1x8xf32>
    %128 = vector.broadcast %127 : vector<2x1x8xf32> to vector<2x16x8xf32>
    %129 = arith.mulf %106, %128 : vector<2x16x8xf32>
    %130 = vector.shape_cast %126 : vector<2x8xf32> to vector<2x1x8xf32>
    %131 = vector.broadcast %130 : vector<2x1x8xf32> to vector<2x16x8xf32>
    %132 = arith.addf %129, %131 : vector<2x16x8xf32>
    %cst_62 = arith.constant 2.000000e+01 : f32
    %133 = vector.broadcast %cst_62 : f32 to vector<2x16x8xf32>
    %134 = arith.minimumf %132, %133 : vector<2x16x8xf32>
    %135 = math.exp %134 : vector<2x16x8xf32>
    %cst_63 = arith.constant 2.000000e+00 : f32
    %136 = vector.broadcast %cst_63 : f32 to vector<2x16x8xf32>
    %137 = arith.addf %135, %136 : vector<2x16x8xf32>
    %138 = arith.mulf %135, %137 : vector<2x16x8xf32>
    %139 = arith.mulf %132, %138 : vector<2x16x8xf32>
    %cst_64 = arith.constant 2.000000e+00 : f32
    %140 = vector.broadcast %cst_64 : f32 to vector<2x16x8xf32>
    %141 = arith.addf %138, %140 : vector<2x16x8xf32>
    %142 = tpu.reciprocal %141 {approx = true} : vector<2x16x8xf32> -> vector<2x16x8xf32>
    %143 = arith.mulf %139, %142 : vector<2x16x8xf32>
    %144 = arith.truncf %0 : vector<2x16x4xf32> to vector<2x16x4xbf16>
    %145 = vector.shape_cast %144 : vector<2x16x4xbf16> to vector<32x4xbf16>
    %c0_65 = arith.constant 0 : index
    %c0_66 = arith.constant 0 : index
    %146 = vector.load %arg6[%c0_65, %c0_66] : memref<4x8xbf16, #tpu.memory_space<vmem>>, vector<4x8xbf16>
    %cst_67 = arith.constant dense<0.000000e+00> : vector<32x8xf32>
    %147 = tpu.matmul %145, %146, %cst_67 {dimension_numbers = #tpu.dot_dimension_numbers<[1], [0], [0], [1], [0, 0, 1, 1], [], []>} : vector<32x4xbf16>, vector<4x8xbf16>, vector<32x8xf32> -> vector<32x8xf32>
    %148 = vector.shape_cast %147 : vector<32x8xf32> to vector<2x16x8xf32>
    %149 = arith.addf %143, %148 : vector<2x16x8xf32>
    %150 = vector.shape_cast %7 : vector<1x8xf32> to vector<1x1x8xf32>
    %151 = vector.broadcast %150 : vector<1x1x8xf32> to vector<2x16x8xf32>
    %152 = arith.addf %149, %151 : vector<2x16x8xf32>
    %c0_68 = arith.constant 0 : index
    %c0_69 = arith.constant 0 : index
    %c0_70 = arith.constant 0 : index
    %153 = vector.load %arg10[%c0_68, %c0_69, %c0_70] : memref<2x16x8xf32, #tpu.memory_space<vmem>>, vector<2x16x8xf32>
    tpu.vector_store %arg10[%c0_68, %c0_69, %c0_70], %152 {strides = array<i32>} : memref<2x16x8xf32, #tpu.memory_space<vmem>>, vector<2x16x8xf32>,
    return
  }
  func.func @transform_0(%arg0: i32) -> (i32, i32, i32) {
    %c0_i32 = arith.constant 0 : i32
    %c0_i32_0 = arith.constant 0 : i32
    %c0_i32_1 = arith.constant 0 : i32
    return %arg0, %c0_i32, %c0_i32_0 : i32, i32, i32
  }
  func.func @transform_1(%arg0: i32) -> (i32, i32, i32) {
    %c0_i32 = arith.constant 0 : i32
    %c0_i32_0 = arith.constant 0 : i32
    %c0_i32_1 = arith.constant 0 : i32
    return %arg0, %c0_i32, %c0_i32_0 : i32, i32, i32
  }
  func.func @transform_2(%arg0: i32) -> (i32, i32, i32) {
    %c0_i32 = arith.constant 0 : i32
    %c0_i32_0 = arith.constant 0 : i32
    %c0_i32_1 = arith.constant 0 : i32
    return %arg0, %c0_i32, %c0_i32_0 : i32, i32, i32
  }
  func.func @transform_3(%arg0: i32) -> (i32, i32, i32) {
    %c0_i32 = arith.constant 0 : i32
    %c0_i32_0 = arith.constant 0 : i32
    %c0_i32_1 = arith.constant 0 : i32
    %c0_i32_2 = arith.constant 0 : i32
    return %c0_i32, %c0_i32_0, %c0_i32_1 : i32, i32, i32
  }
  func.func @transform_4(%arg0: i32) -> (i32, i32, i32) {
    %c0_i32 = arith.constant 0 : i32
    %c0_i32_0 = arith.constant 0 : i32
    %c0_i32_1 = arith.constant 0 : i32
    %c0_i32_2 = arith.constant 0 : i32
    return %c0_i32, %c0_i32_0, %c0_i32_1 : i32, i32, i32
  }
  func.func @transform_5(%arg0: i32) -> (i32, i32) {
    %c0_i32 = arith.constant 0 : i32
    %c0_i32_0 = arith.constant 0 : i32
    %c0_i32_1 = arith.constant 0 : i32
    return %c0_i32, %c0_i32_0 : i32, i32
  }
  func.func @transform_6(%arg0: i32) -> (i32, i32) {
    %c0_i32 = arith.constant 0 : i32
    %c0_i32_0 = arith.constant 0 : i32
    %c0_i32_1 = arith.constant 0 : i32
    return %c0_i32, %c0_i32_0 : i32, i32
  }
  func.func @transform_7(%arg0: i32) -> (i32, i32) {
    %c0_i32 = arith.constant 0 : i32
    %c0_i32_0 = arith.constant 0 : i32
    %c0_i32_1 = arith.constant 0 : i32
    return %c0_i32, %c0_i32_0 : i32, i32
  }
  func.func @transform_8(%arg0: i32) -> (i32, i32) {
    %c0_i32 = arith.constant 0 : i32
    %c0_i32_0 = arith.constant 0 : i32
    %c0_i32_1 = arith.constant 0 : i32
    return %c0_i32, %c0_i32_0 : i32, i32
  }
  func.func @transform_9(%arg0: i32) -> (i32, i32, i32) {
    %c0_i32 = arith.constant 0 : i32
    %c0_i32_0 = arith.constant 0 : i32
    %c0_i32_1 = arith.constant 0 : i32
    return %arg0, %c0_i32, %c0_i32_0 : i32, i32, i32
  }
}

</mosaic_0001>

<llo_original>
// kernel: tpu_custom_call.1
$region0: #{tpu_custom_call.1}
  #allocation0 [shape = 'u32[]', space=smem, size = 0x4, offset = 0x4, fixed_abs, tag = 'smem constant byte address 0x4 - core index']
  #allocation1 [shape = 'u32[144,128]{1,0:T(1,128)}', space=vmem, size = 0x12000, scoped, tag = 'internal scratch']
  %s0 = inlined_call_operand.vmem [shape: f32[2,16,4], index: 0, kind: input, shape index: {}]
  %s1 = inlined_call_operand.vmem [shape: f32[2,1,8], index: 1, kind: input, shape index: {}]
  %s2 = inlined_call_operand.vmem [shape: f32[2,1,8], index: 2, kind: input, shape index: {}]
  %s3 = inlined_call_operand.vmem [shape: bf16[3,4,8], index: 3, kind: input, shape index: {}]
  %s4 = inlined_call_operand.vmem [shape: bf16[3,8,8], index: 4, kind: input, shape index: {}]
  %s5 = inlined_call_operand.vmem [shape: bf16[4,8], index: 5, kind: input, shape index: {}]
  %s6 = inlined_call_operand.vmem [shape: f32[8,8], index: 6, kind: input, shape index: {}]
  %s7 = inlined_call_operand.vmem [shape: f32[8,4], index: 7, kind: input, shape index: {}]
  %s8 = inlined_call_operand.vmem [shape: f32[4,8], index: 8, kind: input, shape index: {}]
  %s9 = inlined_call_operand.vmem [shape: f32[2,16,8], index: 9, kind: output, shape index: {}]
  %s10 = sld [smem:[#allocation0]]
  $region46: #{tpu_custom_call.1} parent=0
    _
  %s12 = ssub.s32 1, %s10
  %s13 = scalar_select 0, %s12, %s10
  // Predicated region
  $region2: #{tpu_custom_call.1} parent=0 // pred_check
    _
  $region3: #{tpu_custom_call.1} parent=0 // pred_check_branch
    %15 = sbr.rel (0) target = $region5
  $region4: #{tpu_custom_call.1} parent=0 // pred_region
    _
  $region5: #{tpu_custom_call.1} parent=0 // pred_fallthru
    _
  // Predicated region
  $region6: #{tpu_custom_call.1} parent=0 // pred_check
    _
  $region7: #{tpu_custom_call.1} parent=0 // pred_check_branch
    %17 = sbr.rel (0) target = $region9
  $region8: #{tpu_custom_call.1} parent=0 // pred_region
    _
  $region9: #{tpu_custom_call.1} parent=0 // pred_fallthru
    _
  // Predicated region
  $region10: #{tpu_custom_call.1} parent=0 // pred_check
    _
  $region11: #{tpu_custom_call.1} parent=0 // pred_check_branch
    %19 = sbr.rel (0) target = $region13
  $region12: #{tpu_custom_call.1} parent=0 // pred_region
    _
  $region13: #{tpu_custom_call.1} parent=0 // pred_fallthru
    _
  // Predicated region
  $region14: #{tpu_custom_call.1} parent=0 // pred_check
    _
  $region15: #{tpu_custom_call.1} parent=0 // pred_check_branch
    %21 = sbr.rel (0) target = $region17
  $region16: #{tpu_custom_call.1} parent=0 // pred_region
    _
  $region17: #{tpu_custom_call.1} parent=0 // pred_fallthru
    _
  // Predicated region
  $region18: #{tpu_custom_call.1} parent=0 // pred_check
    _
  $region19: #{tpu_custom_call.1} parent=0 // pred_check_branch
    %23 = sbr.rel (0) target = $region21
  $region20: #{tpu_custom_call.1} parent=0 // pred_region
    _
  $region21: #{tpu_custom_call.1} parent=0 // pred_fallthru
    _
  // Predicated region
  $region22: #{tpu_custom_call.1} parent=0 // pred_check
    _
  $region23: #{tpu_custom_call.1} parent=0 // pred_check_branch
    %25 = sbr.rel (0) target = $region25
  $region24: #{tpu_custom_call.1} parent=0 // pred_region
    _
  $region25: #{tpu_custom_call.1} parent=0 // pred_fallthru
    _
  // Predicated region
  $region26: #{tpu_custom_call.1} parent=0 // pred_check
    _
  $region27: #{tpu_custom_call.1} parent=0 // pred_check_branch
    %27 = sbr.rel (0) target = $region29
  $region28: #{tpu_custom_call.1} parent=0 // pred_region
    _
  $region29: #{tpu_custom_call.1} parent=0 // pred_fallthru
    _
  // Predicated region
  $region30: #{tpu_custom_call.1} parent=0 // pred_check
    _
  $region31: #{tpu_custom_call.1} parent=0 // pred_check_branch
    %29 = sbr.rel (0) target = $region33
  $region32: #{tpu_custom_call.1} parent=0 // pred_region
    _
  $region33: #{tpu_custom_call.1} parent=0 // pred_fallthru
    _
  // Predicated region
  $region34: #{tpu_custom_call.1} parent=0 // pred_check
    _
  $region35: #{tpu_custom_call.1} parent=0 // pred_check_branch
    %31 = sbr.rel (0) target = $region37
  $region36: #{tpu_custom_call.1} parent=0 // pred_region
    _
  $region37: #{tpu_custom_call.1} parent=0 // pred_fallthru
    _
  %v33 = vld [vmem:[%s0] sm:$0xff]
  %v34 = vld [vmem:[%s0 + $0x8] sm:$0xff]
  %v35 = vld [vmem:[%s0 + $0x10] sm:$0xff]
  %v36 = vld [vmem:[%s0 + $0x18] sm:$0xff]
  %v37 = vld [vmem:[%s6] sm:$0x1]
  %v38 = vld [vmem:[%s6 + $0x1] sm:$0x1]
  %v39 = vld [vmem:[%s6 + $0x2] sm:$0x1]
  %v40 = vld [vmem:[%s6 + $0x3] sm:$0x1]
  %v41 = vld [vmem:[%s6 + $0x4] sm:$0x1]
  %v42 = vld [vmem:[%s6 + $0x5] sm:$0x1]
  %v43 = vld [vmem:[%s6 + $0x6] sm:$0x1]
  %v44 = vld [vmem:[%s7] sm:$0xff]
  %v45 = vld [vmem:[%s8] sm:$0xf]
  %vm50 = vcmask 1040384
  %v51 = vrot.slane %v33, 7
  %v52 = vrot.slane %v34, 7
  %v53 = vsel %vm50, %v51, %v52
  %v54 = vrot.slane %v35, 7
  %v55 = vrot.slane %v36, 7
  %v56 = vsel %vm50, %v54, %v55
  %v61 = vsel %vm50, 0.0, %v51
  %v62 = vsel %vm50, 0.0, %v54
  %v63 = vpack.c.bf16 %v53, %v61
  %v64 = vpack.c.bf16 %v56, %v62
  %v65 = vld [vmem:[%s3] sm:$0x3]
  %v66 = vpack.c.bf16 %v34, %v33
  %v67 = vpack.c.bf16 %v36, %v35
  %s68 = scalar_lea.vmem %s3, 2
  %v69 = vld [vmem:[%s68] sm:$0x3]
  %vm70 = vcmask 31744
  %v72 = vsel %vm70, %v66, 0
  %v75 = vsel %vm70, %v67, 0
  %vm77 = vcmask 1041408
  %v79 = vsel %vm77, %v69, 0
  %81 = vmatprep.subr.bf16.mxu0 0
  %82 = vmatpush1.bf16.msra.mxu0 0
  %83 = vmatprep.subr.bf16.mxu0 0
  %84 = vmatpush1.bf16.msra.mxu0 0
  %85 = vmatprep.subr.bf16.mxu0 0
  %86 = vmatpush1.bf16.msra.mxu0 0
  %87 = vmatprep.subr.bf16.mxu0 0
  %88 = vmatpush1.bf16.msra.mxu0 0
  %89 = vmatprep.subr.bf16.mxu0 0
  %90 = vmatpush1.bf16.msra.mxu0 0
  %91 = vmatprep.subr.bf16.mxu0 0
  %92 = vmatpush1.bf16.msra.mxu0 0
  %93 = vmatprep.subr.bf16.mxu0 0
  %94 = vmatpush1.bf16.msra.mxu0 0
  %95 = vmatprep.subr.bf16.mxu0 0
  %96 = vmatpush1.bf16.msra.mxu0 %v79
  %97 = vmatprep.subr.bf16.mxu0 0
  %98 = vmatpush2.bf16.msra.mxu0 0
  %99 = vmatprep.subr.bf16.mxu0 0
  %100 = vmatpush2.bf16.msra.mxu0 0
  %101 = vmatprep.subr.bf16.mxu0 0
  %102 = vmatpush2.bf16.msra.mxu0 0
  %103 = vmatprep.subr.bf16.mxu0 0
  %104 = vmatpush2.bf16.msra.mxu0 0
  %105 = vmatprep.subr.bf16.mxu0 0
  %106 = vmatpush2.bf16.msra.mxu0 0
  %107 = vmatprep.subr.bf16.mxu0 0
  %108 = vmatpush2.bf16.msra.mxu0 0
  %109 = vmatprep.subr.bf16.mxu0 0
  %110 = vmatpush2.bf16.msra.mxu0 0
  %111 = vmatprep.subr.bf16.mxu0 0
  %112 = vmatpush2.bf16.msra.mxu0 0
  %113 = vmatprep.mubr.bf16.mxu0 0
  %114 = vmatmul.mubr.bf16.gmra.mxu0 %v72
  %v115 = vpop.f32.mrf.mxu0
  %v116 = vadd.f32 0.0, %v115
  %v117 = vpop.f32.mrf.mxu0
  %v118 = vpop.f32.mrf.mxu0
  %v119 = vadd.f32 0.0, %v118
  %v120 = vpop.f32.mrf.mxu0
  %121 = vmatprep.mubr.bf16.mxu0 0
  %122 = vmatmul.mubr.bf16.gmra.mxu0 %v75
  %v123 = vpop.f32.mrf.mxu0
  %v124 = vadd.f32 0.0, %v123
  %v125 = vpop.f32.mrf.mxu0
  %v126 = vpop.f32.mrf.mxu0
  %v127 = vadd.f32 0.0, %v126
  %v128 = vpop.f32.mrf.mxu0
  %129 = vdwg.mxu0
  %v131 = vsel %vm70, %v63, 0
  %v134 = vsel %vm70, %v64, 0
  %v137 = vsel %vm77, %v65, 0
  %139 = vmatprep.subr.bf16.mxu0 0
  %140 = vmatpush1.bf16.msra.mxu0 0
  %141 = vmatprep.subr.bf16.mxu0 0
  %142 = vmatpush1.bf16.msra.mxu0 0
  %143 = vmatprep.subr.bf16.mxu0 0
  %144 = vmatpush1.bf16.msra.mxu0 0
  %145 = vmatprep.subr.bf16.mxu0 0
  %146 = vmatpush1.bf16.msra.mxu0 0
  %147 = vmatprep.subr.bf16.mxu0 0
  %148 = vmatpush1.bf16.msra.mxu0 0
  %149 = vmatprep.subr.bf16.mxu0 0
  %150 = vmatpush1.bf16.msra.mxu0 0
  %151 = vmatprep.subr.bf16.mxu0 0
  %152 = vmatpush1.bf16.msra.mxu0 0
  %153 = vmatprep.subr.bf16.mxu0 0
  %154 = vmatpush1.bf16.msra.mxu0 %v137
  %155 = vmatprep.subr.bf16.mxu0 0
  %156 = vmatpush2.bf16.msra.mxu0 0
  %157 = vmatprep.subr.bf16.mxu0 0
  %158 = vmatpush2.bf16.msra.mxu0 0
  %159 = vmatprep.subr.bf16.mxu0 0
  %160 = vmatpush2.bf16.msra.mxu0 0
  %161 = vmatprep.subr.bf16.mxu0 0
  %162 = vmatpush2.bf16.msra.mxu0 0
  %163 = vmatprep.subr.bf16.mxu0 0
  %164 = vmatpush2.bf16.msra.mxu0 0
  %165 = vmatprep.subr.bf16.mxu0 0
  %166 = vmatpush2.bf16.msra.mxu0 0
  %167 = vmatprep.subr.bf16.mxu0 0
  %168 = vmatpush2.bf16.msra.mxu0 0
  %169 = vmatprep.subr.bf16.mxu0 0
  %170 = vmatpush2.bf16.msra.mxu0 0
  %171 = vmatprep.mubr.bf16.mxu0 0
  %172 = vmatmul.mubr.bf16.gmra.mxu0 %v131
  %v173 = vpop.f32.mrf.mxu0
  %v174 = vadd.f32 %v116, %v173
  %v175 = vpop.f32.mrf.mxu0
  %v176 = vpop.f32.mrf.mxu0
  %v177 = vadd.f32 %v119, %v176
  %v178 = vpop.f32.mrf.mxu0
  %179 = vmatprep.mubr.bf16.mxu0 0
  %180 = vmatmul.mubr.bf16.gmra.mxu0 %v134
  %v181 = vpop.f32.mrf.mxu0
  %v182 = vadd.f32 %v124, %v181
  %v183 = vpop.f32.mrf.mxu0
  %v184 = vpop.f32.mrf.mxu0
  %v185 = vadd.f32 %v127, %v184
  %v186 = vpop.f32.mrf.mxu0
  %187 = vdwg.mxu0
  %vm188 = vcmask 1046528
  %v189 = vrot.slane %v33, 1
  %v190 = vrot.slane %v34, 1
  %v191 = vsel %vm188, %v189, %v190
  %v192 = vrot.slane %v35, 1
  %v193 = vrot.slane %v36, 1
  %v194 = vsel %vm188, %v192, %v193
  %v199 = vsel %vm188, %v190, 0.0
  %v200 = vsel %vm188, %v193, 0.0
  %v201 = vpack.c.bf16 %v199, %v191
  %v202 = vpack.c.bf16 %v200, %v194
  %s203 = scalar_lea.vmem %s3, 4
  %v204 = vld [vmem:[%s203] sm:$0x3]
  %v206 = vsel %vm70, %v201, 0
  %v209 = vsel %vm70, %v202, 0
  %v212 = vsel %vm77, %v204, 0
  %214 = vmatprep.subr.bf16.mxu0 0
  %215 = vmatpush1.bf16.msra.mxu0 0
  %216 = vmatprep.subr.bf16.mxu0 0
  %217 = vmatpush1.bf16.msra.mxu0 0
  %218 = vmatprep.subr.bf16.mxu0 0
  %219 = vmatpush1.bf16.msra.mxu0 0
  %220 = vmatprep.subr.bf16.mxu0 0
  %221 = vmatpush1.bf16.msra.mxu0 0
  %222 = vmatprep.subr.bf16.mxu0 0
  %223 = vmatpush1.bf16.msra.mxu0 0
  %224 = vmatprep.subr.bf16.mxu0 0
  %225 = vmatpush1.bf16.msra.mxu0 0
  %226 = vmatprep.subr.bf16.mxu0 0
  %227 = vmatpush1.bf16.msra.mxu0 0
  %228 = vmatprep.subr.bf16.mxu0 0
  %229 = vmatpush1.bf16.msra.mxu0 %v212
  %230 = vmatprep.subr.bf16.mxu0 0
  %231 = vmatpush2.bf16.msra.mxu0 0
  %232 = vmatprep.subr.bf16.mxu0 0
  %233 = vmatpush2.bf16.msra.mxu0 0
  %234 = vmatprep.subr.bf16.mxu0 0
  %235 = vmatpush2.bf16.msra.mxu0 0
  %236 = vmatprep.subr.bf16.mxu0 0
  %237 = vmatpush2.bf16.msra.mxu0 0
  %238 = vmatprep.subr.bf16.mxu0 0
  %239 = vmatpush2.bf16.msra.mxu0 0
  %240 = vmatprep.subr.bf16.mxu0 0
  %241 = vmatpush2.bf16.msra.mxu0 0
  %242 = vmatprep.subr.bf16.mxu0 0
  %243 = vmatpush2.bf16.msra.mxu0 0
  %244 = vmatprep.subr.bf16.mxu0 0
  %245 = vmatpush2.bf16.msra.mxu0 0
  %246 = vmatprep.mubr.bf16.mxu0 0
  %247 = vmatmul.mubr.bf16.gmra.mxu0 %v206
  %v248 = vpop.f32.mrf.mxu0
  %v249 = vadd.f32 0.0, %v248
  %v250 = vpop.f32.mrf.mxu0
  %v251 = vpop.f32.mrf.mxu0
  %v252 = vadd.f32 0.0, %v251
  %v253 = vpop.f32.mrf.mxu0
  %254 = vmatprep.mubr.bf16.mxu0 0
  %255 = vmatmul.mubr.bf16.gmra.mxu0 %v209
  %v256 = vpop.f32.mrf.mxu0
  %v257 = vadd.f32 0.0, %v256
  %v258 = vpop.f32.mrf.mxu0
  %v259 = vpop.f32.mrf.mxu0
  %v260 = vadd.f32 0.0, %v259
  %v261 = vpop.f32.mrf.mxu0
  %262 = vdwg.mxu0
  %v263 = vadd.f32 %v174, %v249
  %v264 = vadd.f32 %v177, %v252
  %v265 = vadd.f32 %v182, %v257
  %v266 = vadd.f32 %v185, %v260
  %v267 = vlaneseq
  %v268 = vshrl.u32 %v267, 7
  %v269 = vsub.s32 0, %v268
  %v270 = vrot.slane %v37, %v269
  %v271 = vadd.f32 %v263, %v270
  %v272 = vadd.f32 %v264, %v270
  %v273 = vadd.f32 %v265, %v270
  %v274 = vadd.f32 %v266, %v270
  %vm275 = vcmask 64512
  %v276 = vsel %vm275, %v271, 0.0
  %v277 = vsel %vm275, %v272, 0.0
  %v278 = vadd.f32 %v276, %v277
  %v279 = vrot.slane %v278, 4
  %v280 = vadd.f32 %v278, %v279
  %v281 = vrot.slane %v280, 2
  %v282 = vadd.f32 %v280, %v281
  %v283 = vrot.slane %v282, 1
  %v284 = vadd.f32 %v282, %v283
  %v285 = vsel %vm275, %v273, 0.0
  %v286 = vsel %vm275, %v274, 0.0
  %v287 = vadd.f32 %v285, %v286
  %v288 = vrot.slane %v287, 4
  %v289 = vadd.f32 %v287, %v288
  %v290 = vrot.slane %v289, 2
  %v291 = vadd.f32 %v289, %v290
  %v292 = vrot.slane %v291, 1
  %v293 = vadd.f32 %v291, %v292
  %v294 = vmul.f32 %v271, %v271
  %v295 = vmul.f32 %v272, %v272
  %v296 = vmul.f32 %v273, %v273
  %v297 = vmul.f32 %v274, %v274
  %v298 = vsel %vm275, %v294, 0.0
  %v299 = vsel %vm275, %v295, 0.0
  %v300 = vadd.f32 %v298, %v299
  %v301 = vrot.slane %v300, 4
  %v302 = vadd.f32 %v300, %v301
  %v303 = vrot.slane %v302, 2
  %v304 = vadd.f32 %v302, %v303
  %v305 = vrot.slane %v304, 1
  %v306 = vadd.f32 %v304, %v305
  %v307 = vsel %vm275, %v296, 0.0
  %v308 = vsel %vm275, %v297, 0.0
  %v309 = vadd.f32 %v307, %v308
  %v310 = vrot.slane %v309, 4
  %v311 = vadd.f32 %v309, %v310
  %v312 = vrot.slane %v311, 2
  %v313 = vadd.f32 %v311, %v312
  %v314 = vrot.slane %v313, 1
  %v315 = vadd.f32 %v313, %v314
  %vm318 = vcmask 1041409
  %v319 = vsel %vm318, %v293, %v284
  %vm323 = vcmask 1043459
  %v324 = vsel %vm323, %v315, %v306
  %v326 = vsel %vm77, %v319, %v324
  %v328 = vsel %vm275, %v326, 0
  %330 = vmatprep.subr.mxu0 0.0
  %331 = vmatpush1.msra.mxu0 0.0
  %332 = vmatprep.subr.mxu0 0.0
  %333 = vmatpush1.msra.mxu0 0.0
  %334 = vmatprep.subr.mxu0 0.0
  %335 = vmatpush1.msra.mxu0 0.0
  %336 = vmatprep.subr.mxu0 0.0
  %337 = vmatpush1.msra.mxu0 0.0
  %338 = vmatprep.subr.mxu0 0.0
  %339 = vmatpush1.msra.mxu0 0.0
  %340 = vmatprep.subr.mxu0 0.0
  %341 = vmatpush1.msra.mxu0 0.0
  %342 = vmatprep.subr.mxu0 0.0
  %343 = vmatpush1.msra.mxu0 0.0
  %344 = vmatprep.subr.mxu0 0.0
  %345 = vmatpush1.msra.mxu0 0.0
  %346 = vmatprep.subr.mxu0 0.0
  %347 = vmatpush1.msra.mxu0 0.0
  %348 = vmatprep.subr.mxu0 0.0
  %349 = vmatpush1.msra.mxu0 0.0
  %350 = vmatprep.subr.mxu0 0.0
  %351 = vmatpush1.msra.mxu0 0.0
  %352 = vmatprep.subr.mxu0 0.0
  %353 = vmatpush1.msra.mxu0 0.0
  %354 = vmatprep.subr.mxu0 0.0
  %355 = vmatpush1.msra.mxu0 0.0
  %356 = vmatprep.subr.mxu0 0.0
  %357 = vmatpush1.msra.mxu0 0.0
  %358 = vmatprep.subr.mxu0 0.0
  %359 = vmatpush1.msra.mxu0 0.0
  %360 = vmatprep.subr.mxu0 0.0
  %361 = vmatpush1.msra.mxu0 %v44
  %362 = vmatprep.subr.mxu0 0.0
  %363 = vmatpush2.msra.mxu0 0.0
  %364 = vmatprep.subr.mxu0 0.0
  %365 = vmatpush2.msra.mxu0 0.0
  %366 = vmatprep.subr.mxu0 0.0
  %367 = vmatpush2.msra.mxu0 0.0
  %368 = vmatprep.subr.mxu0 0.0
  %369 = vmatpush2.msra.mxu0 0.0
  %370 = vmatprep.subr.mxu0 0.0
  %371 = vmatpush2.msra.mxu0 0.0
  %372 = vmatprep.subr.mxu0 0.0
  %373 = vmatpush2.msra.mxu0 0.0
  %374 = vmatprep.subr.mxu0 0.0
  %375 = vmatpush2.msra.mxu0 0.0
  %376 = vmatprep.subr.mxu0 0.0
  %377 = vmatpush2.msra.mxu0 0.0
  %378 = vmatprep.subr.mxu0 0.0
  %379 = vmatpush2.msra.mxu0 0.0
  %380 = vmatprep.subr.mxu0 0.0
  %381 = vmatpush2.msra.mxu0 0.0
  %382 = vmatprep.subr.mxu0 0.0
  %383 = vmatpush2.msra.mxu0 0.0
  %384 = vmatprep.subr.mxu0 0.0
  %385 = vmatpush2.msra.mxu0 0.0
  %386 = vmatprep.subr.mxu0 0.0
  %387 = vmatpush2.msra.mxu0 0.0
  %388 = vmatprep.subr.mxu0 0.0
  %389 = vmatpush2.msra.mxu0 0.0
  %390 = vmatprep.subr.mxu0 0.0
  %391 = vmatpush2.msra.mxu0 0.0
  %392 = vmatprep.subr.mxu0 0.0
  %393 = vmatpush2.msra.mxu0 0.0
  %394 = vmatprep.mubr.f32.mxu0 0.0
  %395 = vmatmul.mubr.f32.gmra.mxu0 %v328
  %v396 = vpop.f32.mrf.mxu0
  %v397 = vadd.f32 0.0, %v396
  %v398 = vpop.f32.mrf.mxu0
  %399 = vdwg.mxu0
  %v401 = vsel %vm70, %v397, 0
  %vm403 = vcmask 1043456
  %v405 = vsel %vm403, %v45, 0
  %407 = vmatprep.subr.mxu0 0.0
  %408 = vmatpush1.msra.mxu0 0.0
  %409 = vmatprep.subr.mxu0 0.0
  %410 = vmatpush1.msra.mxu0 0.0
  %411 = vmatprep.subr.mxu0 0.0
  %412 = vmatpush1.msra.mxu0 0.0
  %413 = vmatprep.subr.mxu0 0.0
  %414 = vmatpush1.msra.mxu0 0.0
  %415 = vmatprep.subr.mxu0 0.0
  %416 = vmatpush1.msra.mxu0 0.0
  %417 = vmatprep.subr.mxu0 0.0
  %418 = vmatpush1.msra.mxu0 0.0
  %419 = vmatprep.subr.mxu0 0.0
  %420 = vmatpush1.msra.mxu0 0.0
  %421 = vmatprep.subr.mxu0 0.0
  %422 = vmatpush1.msra.mxu0 0.0
  %423 = vmatprep.subr.mxu0 0.0
  %424 = vmatpush1.msra.mxu0 0.0
  %425 = vmatprep.subr.mxu0 0.0
  %426 = vmatpush1.msra.mxu0 0.0
  %427 = vmatprep.subr.mxu0 0.0
  %428 = vmatpush1.msra.mxu0 0.0
  %429 = vmatprep.subr.mxu0 0.0
  %430 = vmatpush1.msra.mxu0 0.0
  %431 = vmatprep.subr.mxu0 0.0
  %432 = vmatpush1.msra.mxu0 0.0
  %433 = vmatprep.subr.mxu0 0.0
  %434 = vmatpush1.msra.mxu0 0.0
  %435 = vmatprep.subr.mxu0 0.0
  %436 = vmatpush1.msra.mxu0 0.0
  %437 = vmatprep.subr.mxu0 0.0
  %438 = vmatpush1.msra.mxu0 %v405
  %439 = vmatprep.subr.mxu0 0.0
  %440 = vmatpush2.msra.mxu0 0.0
  %441 = vmatprep.subr.mxu0 0.0
  %442 = vmatpush2.msra.mxu0 0.0
  %443 = vmatprep.subr.mxu0 0.0
  %444 = vmatpush2.msra.mxu0 0.0
  %445 = vmatprep.subr.mxu0 0.0
  %446 = vmatpush2.msra.mxu0 0.0
  %447 = vmatprep.subr.mxu0 0.0
  %448 = vmatpush2.msra.mxu0 0.0
  %449 = vmatprep.subr.mxu0 0.0
  %450 = vmatpush2.msra.mxu0 0.0
  %451 = vmatprep.subr.mxu0 0.0
  %452 = vmatpush2.msra.mxu0 0.0
  %453 = vmatprep.subr.mxu0 0.0
  %454 = vmatpush2.msra.mxu0 0.0
  %455 = vmatprep.subr.mxu0 0.0
  %456 = vmatpush2.msra.mxu0 0.0
  %457 = vmatprep.subr.mxu0 0.0
  %458 = vmatpush2.msra.mxu0 0.0
  %459 = vmatprep.subr.mxu0 0.0
  %460 = vmatpush2.msra.mxu0 0.0
  %461 = vmatprep.subr.mxu0 0.0
  %462 = vmatpush2.msra.mxu0 0.0
  %463 = vmatprep.subr.mxu0 0.0
  %464 = vmatpush2.msra.mxu0 0.0
  %465 = vmatprep.subr.mxu0 0.0
  %466 = vmatpush2.msra.mxu0 0.0
  %467 = vmatprep.subr.mxu0 0.0
  %468 = vmatpush2.msra.mxu0 0.0
  %469 = vmatprep.subr.mxu0 0.0
  %470 = vmatpush2.msra.mxu0 0.0
  %471 = vmatprep.mubr.f32.mxu0 0.0
  %472 = vmatmul.mubr.f32.gmra.mxu0 %v401
  %v473 = vpop.f32.mrf.mxu0
  %v474 = vadd.f32 0.0, %v473
  %v475 = vpop.f32.mrf.mxu0
  %476 = vdwg.mxu0
  %v477 = vmul.f32 %v474, 0.03125
  %v478 = vmul.f32 %v477, %v477
  %v480 = vrot.slane %v478, 6
  %v482 = vsub.f32 %v477, %v480
  %v483 = vadd.f32 %v482, 1e-05
  %v484 = vrsqrt.pop %v483
  %v485 = vlaneseq
  %v486 = vshrl.u32 %v485, 7
  %v487 = vsub.s32 0, %v486
  %v488 = vrot.slane %v38, %v487
  %v489 = vmul.f32 %v484, %v488
  %v491 = vrot.slane %v489, 2
  %v493 = vmul.f32 %v477, %v491
  %v494 = vlaneseq
  %v495 = vshrl.u32 %v494, 7
  %v496 = vsub.s32 0, %v495
  %v497 = vrot.slane %v39, %v496
  %v498 = vsub.f32 %v497, %v493
  %v500 = vunpack.c.l.s4 1966171168
  %v501 = vunpack.c.0.s8 %v500
  %v502 = vlaneseq
  %v503 = vshrl.u32 %v502, 7
  %v504 = vsub.s32 %v501, %v503
  %v505 = vrot.slane %v489, %v504
  %v506 = vcombine.high %v505, %v505
  %v508 = vunpack.c.l.s4 1966171168
  %v509 = vunpack.c.0.s8 %v508
  %v510 = vlaneseq
  %v511 = vshrl.u32 %v510, 7
  %v512 = vsub.s32 %v509, %v511
  %v513 = vrot.slane %v505, %v512
  %v515 = vunpack.c.l.s4 1966171168
  %v516 = vunpack.c.0.s8 %v515
  %v517 = vlaneseq
  %v518 = vshrl.u32 %v517, 7
  %v519 = vsub.s32 %v516, %v518
  %v520 = vrot.slane %v506, %v519
  %v521 = vcombine.high %v513, %v513
  %v522 = vcombine.high %v520, %v520
  %v523 = vlaneseq
  %v524 = vshrl.u32 %v523, 7
  %v525 = vsub.s32 0, %v524
  %v526 = vrot.slane %v521, %v525
  %v527 = vlaneseq
  %v528 = vshrl.u32 %v527, 7
  %v529 = vsub.s32 0, %v528
  %v530 = vrot.slane %v522, %v529
  %v533 = vmul.f32 %v271, %v526
  %v534 = vmul.f32 %v272, %v526
  %v535 = vmul.f32 %v273, %v530
  %v536 = vmul.f32 %v274, %v530
  %v539 = vunpack.c.l.s4 1966171168
  %v540 = vunpack.c.0.s8 %v539
  %v541 = vlaneseq
  %v542 = vshrl.u32 %v541, 7
  %v543 = vsub.s32 %v540, %v542
  %v544 = vrot.slane %v498, %v543
  %v545 = vcombine.high %v544, %v544
  %v547 = vunpack.c.l.s4 1966171168
  %v548 = vunpack.c.0.s8 %v547
  %v549 = vlaneseq
  %v550 = vshrl.u32 %v549, 7
  %v551 = vsub.s32 %v548, %v550
  %v552 = vrot.slane %v544, %v551
  %v554 = vunpack.c.l.s4 1966171168
  %v555 = vunpack.c.0.s8 %v554
  %v556 = vlaneseq
  %v557 = vshrl.u32 %v556, 7
  %v558 = vsub.s32 %v555, %v557
  %v559 = vrot.slane %v545, %v558
  %v560 = vlaneseq
  %v561 = vshrl.u32 %v560, 7
  %v562 = vsub.s32 0, %v561
  %v563 = vrot.slane %v552, %v562
  %v564 = vlaneseq
  %v565 = vshrl.u32 %v564, 7
  %v566 = vsub.s32 0, %v565
  %v567 = vrot.slane %v559, %v566
  %v570 = vadd.f32 %v533, %v563
  %v571 = vadd.f32 %v534, %v563
  %v572 = vadd.f32 %v535, %v567
  %v573 = vadd.f32 %v536, %v567
  %v574 = vmin.f32 %v570, 20.0
  %v575 = vmin.f32 %v571, 20.0
  %v576 = vmin.f32 %v572, 20.0
  %v577 = vmin.f32 %v573, 20.0
  %v578 = vmul.f32 %v574, 1.442695
  %v579 = vpow.pop %v578
  %v580 = vmul.f32 %v575, 1.442695
  %v581 = vpow.pop %v580
  %v582 = vmul.f32 %v576, 1.442695
  %v583 = vpow.pop %v582
  %v584 = vmul.f32 %v577, 1.442695
  %v585 = vpow.pop %v584
  %v586 = vadd.f32 %v579, 2.0
  %v587 = vadd.f32 %v581, 2.0
  %v588 = vadd.f32 %v583, 2.0
  %v589 = vadd.f32 %v585, 2.0
  %v590 = vmul.f32 %v579, %v586
  %v591 = vmul.f32 %v581, %v587
  %v592 = vmul.f32 %v583, %v588
  %v593 = vmul.f32 %v585, %v589
  %v594 = vmul.f32 %v570, %v590
  %v595 = vmul.f32 %v571, %v591
  %v596 = vmul.f32 %v572, %v592
  %v597 = vmul.f32 %v573, %v593
  %v598 = vadd.f32 %v590, 2.0
  %v599 = vadd.f32 %v591, 2.0
  %v600 = vadd.f32 %v592, 2.0
  %v601 = vadd.f32 %v593, 2.0
  %v602 = vrcp.pop %v598
  %v603 = vrcp.pop %v599
  %v604 = vrcp.pop %v600
  %v605 = vrcp.pop %v601
  %v606 = vmul.f32 %v594, %v602
  %v607 = vmul.f32 %v595, %v603
  %v608 = vmul.f32 %v596, %v604
  %v609 = vmul.f32 %v597, %v605
  %v610 = vld [vmem:[%s1] sm:$0x1]
  %v611 = vld [vmem:[%s1 + $0x1] sm:$0x1]
  %v614 = vlaneseq
  %v615 = vshrl.u32 %v614, 7
  %v616 = vsub.s32 0, %v615
  %v617 = vrot.slane %v610, %v616
  %v618 = vlaneseq
  %v619 = vshrl.u32 %v618, 7
  %v620 = vsub.s32 0, %v619
  %v621 = vrot.slane %v611, %v620
  %v624 = vmul.f32 %v617, %v606
  %v625 = vmul.f32 %v617, %v607
  %v626 = vmul.f32 %v621, %v608
  %v627 = vmul.f32 %v621, %v609
  %v628 = vld [vmem:[%s2] sm:$0x1]
  %v629 = vld [vmem:[%s2 + $0x1] sm:$0x1]
  %v632 = vlaneseq
  %v633 = vshrl.u32 %v632, 7
  %v634 = vsub.s32 0, %v633
  %v635 = vrot.slane %v628, %v634
  %v636 = vlaneseq
  %v637 = vshrl.u32 %v636, 7
  %v638 = vsub.s32 0, %v637
  %v639 = vrot.slane %v629, %v638
  %v642 = vadd.f32 %v624, %v635
  %v643 = vadd.f32 %v625, %v635
  %v644 = vadd.f32 %v626, %v639
  %v645 = vadd.f32 %v627, %v639
  %v650 = vrot.slane %v642, 7
  %v651 = vrot.slane %v643, 7
  %v652 = vsel %vm50, %v650, %v651
  %v653 = vrot.slane %v644, 7
  %v654 = vrot.slane %v645, 7
  %v655 = vsel %vm50, %v653, %v654
  %v660 = vsel %vm50, 0.0, %v650
  %v661 = vsel %vm50, 0.0, %v653
  %v662 = vpack.c.bf16 %v652, %v660
  %v663 = vpack.c.bf16 %v655, %v661
  %v664 = vld [vmem:[%s4] sm:$0xf]
  %v665 = vpack.c.bf16 %v643, %v642
  %v666 = vpack.c.bf16 %v645, %v644
  %s667 = scalar_lea.vmem %s4, 4
  %v668 = vld [vmem:[%s667] sm:$0xf]
  %v670 = vsel %vm275, %v665, 0
  %v673 = vsel %vm275, %v666, 0
  %v676 = vsel %vm403, %v668, 0
  %678 = vmatprep.subr.bf16.mxu0 0
  %679 = vmatpush1.bf16.msra.mxu0 0
  %680 = vmatprep.subr.bf16.mxu0 0
  %681 = vmatpush1.bf16.msra.mxu0 0
  %682 = vmatprep.subr.bf16.mxu0 0
  %683 = vmatpush1.bf16.msra.mxu0 0
  %684 = vmatprep.subr.bf16.mxu0 0
  %685 = vmatpush1.bf16.msra.mxu0 0
  %686 = vmatprep.subr.bf16.mxu0 0
  %687 = vmatpush1.bf16.msra.mxu0 0
  %688 = vmatprep.subr.bf16.mxu0 0
  %689 = vmatpush1.bf16.msra.mxu0 0
  %690 = vmatprep.subr.bf16.mxu0 0
  %691 = vmatpush1.bf16.msra.mxu0 0
  %692 = vmatprep.subr.bf16.mxu0 0
  %693 = vmatpush1.bf16.msra.mxu0 %v676
  %694 = vmatprep.subr.bf16.mxu0 0
  %695 = vmatpush2.bf16.msra.mxu0 0
  %696 = vmatprep.subr.bf16.mxu0 0
  %697 = vmatpush2.bf16.msra.mxu0 0
  %698 = vmatprep.subr.bf16.mxu0 0
  %699 = vmatpush2.bf16.msra.mxu0 0
  %700 = vmatprep.subr.bf16.mxu0 0
  %701 = vmatpush2.bf16.msra.mxu0 0
  %702 = vmatprep.subr.bf16.mxu0 0
  %703 = vmatpush2.bf16.msra.mxu0 0
  %704 = vmatprep.subr.bf16.mxu0 0
  %705 = vmatpush2.bf16.msra.mxu0 0
  %706 = vmatprep.subr.bf16.mxu0 0
  %707 = vmatpush2.bf16.msra.mxu0 0
  %708 = vmatprep.subr.bf16.mxu0 0
  %709 = vmatpush2.bf16.msra.mxu0 0
  %710 = vmatprep.mubr.bf16.mxu0 0
  %711 = vmatmul.mubr.bf16.gmra.mxu0 %v670
  %v712 = vpop.f32.mrf.mxu0
  %v713 = vadd.f32 0.0, %v712
  %v714 = vpop.f32.mrf.mxu0
  %v715 = vpop.f32.mrf.mxu0
  %v716 = vadd.f32 0.0, %v715
  %v717 = vpop.f32.mrf.mxu0
  %718 = vmatprep.mubr.bf16.mxu0 0
  %719 = vmatmul.mubr.bf16.gmra.mxu0 %v673
  %v720 = vpop.f32.mrf.mxu0
  %v721 = vadd.f32 0.0, %v720
  %v722 = vpop.f32.mrf.mxu0
  %v723 = vpop.f32.mrf.mxu0
  %v724 = vadd.f32 0.0, %v723
  %v725 = vpop.f32.mrf.mxu0
  %726 = vdwg.mxu0
  %v728 = vsel %vm275, %v662, 0
  %v731 = vsel %vm275, %v663, 0
  %v734 = vsel %vm403, %v664, 0
  %736 = vmatprep.subr.bf16.mxu0 0
  %737 = vmatpush1.bf16.msra.mxu0 0
  %738 = vmatprep.subr.bf16.mxu0 0
  %739 = vmatpush1.bf16.msra.mxu0 0
  %740 = vmatprep.subr.bf16.mxu0 0
  %741 = vmatpush1.bf16.msra.mxu0 0
  %742 = vmatprep.subr.bf16.mxu0 0
  %743 = vmatpush1.bf16.msra.mxu0 0
  %744 = vmatprep.subr.bf16.mxu0 0
  %745 = vmatpush1.bf16.msra.mxu0 0
  %746 = vmatprep.subr.bf16.mxu0 0
  %747 = vmatpush1.bf16.msra.mxu0 0
  %748 = vmatprep.subr.bf16.mxu0 0
  %749 = vmatpush1.bf16.msra.mxu0 0
  %750 = vmatprep.subr.bf16.mxu0 0
  %751 = vmatpush1.bf16.msra.mxu0 %v734
  %752 = vmatprep.subr.bf16.mxu0 0
  %753 = vmatpush2.bf16.msra.mxu0 0
  %754 = vmatprep.subr.bf16.mxu0 0
  %755 = vmatpush2.bf16.msra.mxu0 0
  %756 = vmatprep.subr.bf16.mxu0 0
  %757 = vmatpush2.bf16.msra.mxu0 0
  %758 = vmatprep.subr.bf16.mxu0 0
  %759 = vmatpush2.bf16.msra.mxu0 0
  %760 = vmatprep.subr.bf16.mxu0 0
  %761 = vmatpush2.bf16.msra.mxu0 0
  %762 = vmatprep.subr.bf16.mxu0 0
  %763 = vmatpush2.bf16.msra.mxu0 0
  %764 = vmatprep.subr.bf16.mxu0 0
  %765 = vmatpush2.bf16.msra.mxu0 0
  %766 = vmatprep.subr.bf16.mxu0 0
  %767 = vmatpush2.bf16.msra.mxu0 0
  %768 = vmatprep.mubr.bf16.mxu0 0
  %769 = vmatmul.mubr.bf16.gmra.mxu0 %v728
  %v770 = vpop.f32.mrf.mxu0
  %v771 = vadd.f32 %v713, %v770
  %v772 = vpop.f32.mrf.mxu0
  %v773 = vpop.f32.mrf.mxu0
  %v774 = vadd.f32 %v716, %v773
  %v775 = vpop.f32.mrf.mxu0
  %776 = vmatprep.mubr.bf16.mxu0 0
  %777 = vmatmul.mubr.bf16.gmra.mxu0 %v731
  %v778 = vpop.f32.mrf.mxu0
  %v779 = vadd.f32 %v721, %v778
  %v780 = vpop.f32.mrf.mxu0
  %v781 = vpop.f32.mrf.mxu0
  %v782 = vadd.f32 %v724, %v781
  %v783 = vpop.f32.mrf.mxu0
  %784 = vdwg.mxu0
  %v785 = vrot.slane %v642, 1
  %v786 = vrot.slane %v643, 1
  %v787 = vsel %vm188, %v785, %v786
  %v788 = vrot.slane %v644, 1
  %v789 = vrot.slane %v645, 1
  %v790 = vsel %vm188, %v788, %v789
  %v795 = vsel %vm188, %v786, 0.0
  %v796 = vsel %vm188, %v789, 0.0
  %v797 = vpack.c.bf16 %v795, %v787
  %v798 = vpack.c.bf16 %v796, %v790
  %s799 = scalar_lea.vmem %s4, 8
  %v800 = vld [vmem:[%s799] sm:$0xf]
  %v802 = vsel %vm275, %v797, 0
  %v805 = vsel %vm275, %v798, 0
  %v808 = vsel %vm403, %v800, 0
  %810 = vmatprep.subr.bf16.mxu0 0
  %811 = vmatpush1.bf16.msra.mxu0 0
  %812 = vmatprep.subr.bf16.mxu0 0
  %813 = vmatpush1.bf16.msra.mxu0 0
  %814 = vmatprep.subr.bf16.mxu0 0
  %815 = vmatpush1.bf16.msra.mxu0 0
  %816 = vmatprep.subr.bf16.mxu0 0
  %817 = vmatpush1.bf16.msra.mxu0 0
  %818 = vmatprep.subr.bf16.mxu0 0
  %819 = vmatpush1.bf16.msra.mxu0 0
  %820 = vmatprep.subr.bf16.mxu0 0
  %821 = vmatpush1.bf16.msra.mxu0 0
  %822 = vmatprep.subr.bf16.mxu0 0
  %823 = vmatpush1.bf16.msra.mxu0 0
  %824 = vmatprep.subr.bf16.mxu0 0
  %825 = vmatpush1.bf16.msra.mxu0 %v808
  %826 = vmatprep.subr.bf16.mxu0 0
  %827 = vmatpush2.bf16.msra.mxu0 0
  %828 = vmatprep.subr.bf16.mxu0 0
  %829 = vmatpush2.bf16.msra.mxu0 0
  %830 = vmatprep.subr.bf16.mxu0 0
  %831 = vmatpush2.bf16.msra.mxu0 0
  %832 = vmatprep.subr.bf16.mxu0 0
  %833 = vmatpush2.bf16.msra.mxu0 0
  %834 = vmatprep.subr.bf16.mxu0 0
  %835 = vmatpush2.bf16.msra.mxu0 0
  %836 = vmatprep.subr.bf16.mxu0 0
  %837 = vmatpush2.bf16.msra.mxu0 0
  %838 = vmatprep.subr.bf16.mxu0 0
  %839 = vmatpush2.bf16.msra.mxu0 0
  %840 = vmatprep.subr.bf16.mxu0 0
  %841 = vmatpush2.bf16.msra.mxu0 0
  %842 = vmatprep.mubr.bf16.mxu0 0
  %843 = vmatmul.mubr.bf16.gmra.mxu0 %v802
  %v844 = vpop.f32.mrf.mxu0
  %v845 = vadd.f32 0.0, %v844
  %v846 = vpop.f32.mrf.mxu0
  %v847 = vpop.f32.mrf.mxu0
  %v848 = vadd.f32 0.0, %v847
  %v849 = vpop.f32.mrf.mxu0
  %850 = vmatprep.mubr.bf16.mxu0 0
  %851 = vmatmul.mubr.bf16.gmra.mxu0 %v805
  %v852 = vpop.f32.mrf.mxu0
  %v853 = vadd.f32 0.0, %v852
  %v854 = vpop.f32.mrf.mxu0
  %v855 = vpop.f32.mrf.mxu0
  %v856 = vadd.f32 0.0, %v855
  %v857 = vpop.f32.mrf.mxu0
  %858 = vdwg.mxu0
  %v859 = vadd.f32 %v771, %v845
  %v860 = vadd.f32 %v774, %v848
  %v861 = vadd.f32 %v779, %v853
  %v862 = vadd.f32 %v782, %v856
  %v863 = vlaneseq
  %v864 = vshrl.u32 %v863, 7
  %v865 = vsub.s32 0, %v864
  %v866 = vrot.slane %v40, %v865
  %v867 = vadd.f32 %v859, %v866
  %v868 = vadd.f32 %v860, %v866
  %v869 = vadd.f32 %v861, %v866
  %v870 = vadd.f32 %v862, %v866
  %v871 = vsel %vm275, %v867, 0.0
  %v872 = vsel %vm275, %v868, 0.0
  %v873 = vadd.f32 %v871, %v872
  %v874 = vrot.slane %v873, 4
  %v875 = vadd.f32 %v873, %v874
  %v876 = vrot.slane %v875, 2
  %v877 = vadd.f32 %v875, %v876
  %v878 = vrot.slane %v877, 1
  %v879 = vadd.f32 %v877, %v878
  %v880 = vsel %vm275, %v869, 0.0
  %v881 = vsel %vm275, %v870, 0.0
  %v882 = vadd.f32 %v880, %v881
  %v883 = vrot.slane %v882, 4
  %v884 = vadd.f32 %v882, %v883
  %v885 = vrot.slane %v884, 2
  %v886 = vadd.f32 %v884, %v885
  %v887 = vrot.slane %v886, 1
  %v888 = vadd.f32 %v886, %v887
  %v889 = vmul.f32 %v867, %v867
  %v890 = vmul.f32 %v868, %v868
  %v891 = vmul.f32 %v869, %v869
  %v892 = vmul.f32 %v870, %v870
  %v893 = vsel %vm275, %v889, 0.0
  %v894 = vsel %vm275, %v890, 0.0
  %v895 = vadd.f32 %v893, %v894
  %v896 = vrot.slane %v895, 4
  %v897 = vadd.f32 %v895, %v896
  %v898 = vrot.slane %v897, 2
  %v899 = vadd.f32 %v897, %v898
  %v900 = vrot.slane %v899, 1
  %v901 = vadd.f32 %v899, %v900
  %v902 = vsel %vm275, %v891, 0.0
  %v903 = vsel %vm275, %v892, 0.0
  %v904 = vadd.f32 %v902, %v903
  %v905 = vrot.slane %v904, 4
  %v906 = vadd.f32 %v904, %v905
  %v907 = vrot.slane %v906, 2
  %v908 = vadd.f32 %v906, %v907
  %v909 = vrot.slane %v908, 1
  %v910 = vadd.f32 %v908, %v909
  %v913 = vsel %vm318, %v888, %v879
  %v917 = vsel %vm323, %v910, %v901
  %v919 = vsel %vm77, %v913, %v917
  %v921 = vsel %vm275, %v919, 0
  %923 = vmatprep.subr.mxu0 0.0
  %924 = vmatpush1.msra.mxu0 0.0
  %925 = vmatprep.subr.mxu0 0.0
  %926 = vmatpush1.msra.mxu0 0.0
  %927 = vmatprep.subr.mxu0 0.0
  %928 = vmatpush1.msra.mxu0 0.0
  %929 = vmatprep.subr.mxu0 0.0
  %930 = vmatpush1.msra.mxu0 0.0
  %931 = vmatprep.subr.mxu0 0.0
  %932 = vmatpush1.msra.mxu0 0.0
  %933 = vmatprep.subr.mxu0 0.0
  %934 = vmatpush1.msra.mxu0 0.0
  %935 = vmatprep.subr.mxu0 0.0
  %936 = vmatpush1.msra.mxu0 0.0
  %937 = vmatprep.subr.mxu0 0.0
  %938 = vmatpush1.msra.mxu0 0.0
  %939 = vmatprep.subr.mxu0 0.0
  %940 = vmatpush1.msra.mxu0 0.0
  %941 = vmatprep.subr.mxu0 0.0
  %942 = vmatpush1.msra.mxu0 0.0
  %943 = vmatprep.subr.mxu0 0.0
  %944 = vmatpush1.msra.mxu0 0.0
  %945 = vmatprep.subr.mxu0 0.0
  %946 = vmatpush1.msra.mxu0 0.0
  %947 = vmatprep.subr.mxu0 0.0
  %948 = vmatpush1.msra.mxu0 0.0
  %949 = vmatprep.subr.mxu0 0.0
  %950 = vmatpush1.msra.mxu0 0.0
  %951 = vmatprep.subr.mxu0 0.0
  %952 = vmatpush1.msra.mxu0 0.0
  %953 = vmatprep.subr.mxu0 0.0
  %954 = vmatpush1.msra.mxu0 %v44
  %955 = vmatprep.subr.mxu0 0.0
  %956 = vmatpush2.msra.mxu0 0.0
  %957 = vmatprep.subr.mxu0 0.0
  %958 = vmatpush2.msra.mxu0 0.0
  %959 = vmatprep.subr.mxu0 0.0
  %960 = vmatpush2.msra.mxu0 0.0
  %961 = vmatprep.subr.mxu0 0.0
  %962 = vmatpush2.msra.mxu0 0.0
  %963 = vmatprep.subr.mxu0 0.0
  %964 = vmatpush2.msra.mxu0 0.0
  %965 = vmatprep.subr.mxu0 0.0
  %966 = vmatpush2.msra.mxu0 0.0
  %967 = vmatprep.subr.mxu0 0.0
  %968 = vmatpush2.msra.mxu0 0.0
  %969 = vmatprep.subr.mxu0 0.0
  %970 = vmatpush2.msra.mxu0 0.0
  %971 = vmatprep.subr.mxu0 0.0
  %972 = vmatpush2.msra.mxu0 0.0
  %973 = vmatprep.subr.mxu0 0.0
  %974 = vmatpush2.msra.mxu0 0.0
  %975 = vmatprep.subr.mxu0 0.0
  %976 = vmatpush2.msra.mxu0 0.0
  %977 = vmatprep.subr.mxu0 0.0
  %978 = vmatpush2.msra.mxu0 0.0
  %979 = vmatprep.subr.mxu0 0.0
  %980 = vmatpush2.msra.mxu0 0.0
  %981 = vmatprep.subr.mxu0 0.0
  %982 = vmatpush2.msra.mxu0 0.0
  %983 = vmatprep.subr.mxu0 0.0
  %984 = vmatpush2.msra.mxu0 0.0
  %985 = vmatprep.subr.mxu0 0.0
  %986 = vmatpush2.msra.mxu0 0.0
  %987 = vmatprep.mubr.f32.mxu0 0.0
  %988 = vmatmul.mubr.f32.gmra.mxu0 %v921
  %v989 = vpop.f32.mrf.mxu0
  %v990 = vadd.f32 0.0, %v989
  %v991 = vpop.f32.mrf.mxu0
  %992 = vdwg.mxu0
  %v994 = vsel %vm70, %v990, 0
  %996 = vmatprep.subr.mxu0 0.0
  %997 = vmatpush1.msra.mxu0 0.0
  %998 = vmatprep.subr.mxu0 0.0
  %999 = vmatpush1.msra.mxu0 0.0
  %1000 = vmatprep.subr.mxu0 0.0
  %1001 = vmatpush1.msra.mxu0 0.0
  %1002 = vmatprep.subr.mxu0 0.0
  %1003 = vmatpush1.msra.mxu0 0.0
  %1004 = vmatprep.subr.mxu0 0.0
  %1005 = vmatpush1.msra.mxu0 0.0
  %1006 = vmatprep.subr.mxu0 0.0
  %1007 = vmatpush1.msra.mxu0 0.0
  %1008 = vmatprep.subr.mxu0 0.0
  %1009 = vmatpush1.msra.mxu0 0.0
  %1010 = vmatprep.subr.mxu0 0.0
  %1011 = vmatpush1.msra.mxu0 0.0
  %1012 = vmatprep.subr.mxu0 0.0
  %1013 = vmatpush1.msra.mxu0 0.0
  %1014 = vmatprep.subr.mxu0 0.0
  %1015 = vmatpush1.msra.mxu0 0.0
  %1016 = vmatprep.subr.mxu0 0.0
  %1017 = vmatpush1.msra.mxu0 0.0
  %1018 = vmatprep.subr.mxu0 0.0
  %1019 = vmatpush1.msra.mxu0 0.0
  %1020 = vmatprep.subr.mxu0 0.0
  %1021 = vmatpush1.msra.mxu0 0.0
  %1022 = vmatprep.subr.mxu0 0.0
  %1023 = vmatpush1.msra.mxu0 0.0
  %1024 = vmatprep.subr.mxu0 0.0
  %1025 = vmatpush1.msra.mxu0 0.0
  %1026 = vmatprep.subr.mxu0 0.0
  %1027 = vmatpush1.msra.mxu0 %v405
  %1028 = vmatprep.subr.mxu0 0.0
  %1029 = vmatpush2.msra.mxu0 0.0
  %1030 = vmatprep.subr.mxu0 0.0
  %1031 = vmatpush2.msra.mxu0 0.0
  %1032 = vmatprep.subr.mxu0 0.0
  %1033 = vmatpush2.msra.mxu0 0.0
  %1034 = vmatprep.subr.mxu0 0.0
  %1035 = vmatpush2.msra.mxu0 0.0
  %1036 = vmatprep.subr.mxu0 0.0
  %1037 = vmatpush2.msra.mxu0 0.0
  %1038 = vmatprep.subr.mxu0 0.0
  %1039 = vmatpush2.msra.mxu0 0.0
  %1040 = vmatprep.subr.mxu0 0.0
  %1041 = vmatpush2.msra.mxu0 0.0
  %1042 = vmatprep.subr.mxu0 0.0
  %1043 = vmatpush2.msra.mxu0 0.0
  %1044 = vmatprep.subr.mxu0 0.0
  %1045 = vmatpush2.msra.mxu0 0.0
  %1046 = vmatprep.subr.mxu0 0.0
  %1047 = vmatpush2.msra.mxu0 0.0
  %1048 = vmatprep.subr.mxu0 0.0
  %1049 = vmatpush2.msra.mxu0 0.0
  %1050 = vmatprep.subr.mxu0 0.0
  %1051 = vmatpush2.msra.mxu0 0.0
  %1052 = vmatprep.subr.mxu0 0.0
  %1053 = vmatpush2.msra.mxu0 0.0
  %1054 = vmatprep.subr.mxu0 0.0
  %1055 = vmatpush2.msra.mxu0 0.0
  %1056 = vmatprep.subr.mxu0 0.0
  %1057 = vmatpush2.msra.mxu0 0.0
  %1058 = vmatprep.subr.mxu0 0.0
  %1059 = vmatpush2.msra.mxu0 0.0
  %1060 = vmatprep.mubr.f32.mxu0 0.0
  %1061 = vmatmul.mubr.f32.gmra.mxu0 %v994
  %v1062 = vpop.f32.mrf.mxu0
  %v1063 = vadd.f32 0.0, %v1062
  %v1064 = vpop.f32.mrf.mxu0
  %1065 = vdwg.mxu0
  %v1066 = vmul.f32 %v1063, 0.03125
  %v1067 = vmul.f32 %v1066, %v1066
  %v1069 = vrot.slane %v1067, 6
  %v1071 = vsub.f32 %v1066, %v1069
  %v1072 = vadd.f32 %v1071, 1e-05
  %v1073 = vrsqrt.pop %v1072
  %v1074 = vlaneseq
  %v1075 = vshrl.u32 %v1074, 7
  %v1076 = vsub.s32 0, %v1075
  %v1077 = vrot.slane %v41, %v1076
  %v1078 = vmul.f32 %v1073, %v1077
  %v1080 = vrot.slane %v1078, 2
  %v1082 = vmul.f32 %v1066, %v1080
  %v1083 = vlaneseq
  %v1084 = vshrl.u32 %v1083, 7
  %v1085 = vsub.s32 0, %v1084
  %v1086 = vrot.slane %v42, %v1085
  %v1087 = vsub.f32 %v1086, %v1082
  %v1089 = vunpack.c.l.s4 1966171168
  %v1090 = vunpack.c.0.s8 %v1089
  %v1091 = vlaneseq
  %v1092 = vshrl.u32 %v1091, 7
  %v1093 = vsub.s32 %v1090, %v1092
  %v1094 = vrot.slane %v1078, %v1093
  %v1095 = vcombine.high %v1094, %v1094
  %v1097 = vunpack.c.l.s4 1966171168
  %v1098 = vunpack.c.0.s8 %v1097
  %v1099 = vlaneseq
  %v1100 = vshrl.u32 %v1099, 7
  %v1101 = vsub.s32 %v1098, %v1100
  %v1102 = vrot.slane %v1094, %v1101
  %v1104 = vunpack.c.l.s4 1966171168
  %v1105 = vunpack.c.0.s8 %v1104
  %v1106 = vlaneseq
  %v1107 = vshrl.u32 %v1106, 7
  %v1108 = vsub.s32 %v1105, %v1107
  %v1109 = vrot.slane %v1095, %v1108
  %v1110 = vcombine.high %v1102, %v1102
  %v1111 = vcombine.high %v1109, %v1109
  %v1112 = vlaneseq
  %v1113 = vshrl.u32 %v1112, 7
  %v1114 = vsub.s32 0, %v1113
  %v1115 = vrot.slane %v1110, %v1114
  %v1116 = vlaneseq
  %v1117 = vshrl.u32 %v1116, 7
  %v1118 = vsub.s32 0, %v1117
  %v1119 = vrot.slane %v1111, %v1118
  %v1122 = vmul.f32 %v867, %v1115
  %v1123 = vmul.f32 %v868, %v1115
  %v1124 = vmul.f32 %v869, %v1119
  %v1125 = vmul.f32 %v870, %v1119
  %v1128 = vunpack.c.l.s4 1966171168
  %v1129 = vunpack.c.0.s8 %v1128
  %v1130 = vlaneseq
  %v1131 = vshrl.u32 %v1130, 7
  %v1132 = vsub.s32 %v1129, %v1131
  %v1133 = vrot.slane %v1087, %v1132
  %v1134 = vcombine.high %v1133, %v1133
  %v1136 = vunpack.c.l.s4 1966171168
  %v1137 = vunpack.c.0.s8 %v1136
  %v1138 = vlaneseq
  %v1139 = vshrl.u32 %v1138, 7
  %v1140 = vsub.s32 %v1137, %v1139
  %v1141 = vrot.slane %v1133, %v1140
  %v1143 = vunpack.c.l.s4 1966171168
  %v1144 = vunpack.c.0.s8 %v1143
  %v1145 = vlaneseq
  %v1146 = vshrl.u32 %v1145, 7
  %v1147 = vsub.s32 %v1144, %v1146
  %v1148 = vrot.slane %v1134, %v1147
  %v1149 = vlaneseq
  %v1150 = vshrl.u32 %v1149, 7
  %v1151 = vsub.s32 0, %v1150
  %v1152 = vrot.slane %v1141, %v1151
  %v1153 = vlaneseq
  %v1154 = vshrl.u32 %v1153, 7
  %v1155 = vsub.s32 0, %v1154
  %v1156 = vrot.slane %v1148, %v1155
  %v1159 = vadd.f32 %v1122, %v1152
  %v1160 = vadd.f32 %v1123, %v1152
  %v1161 = vadd.f32 %v1124, %v1156
  %v1162 = vadd.f32 %v1125, %v1156
  %v1163 = vmin.f32 %v1159, 20.0
  %v1164 = vmin.f32 %v1160, 20.0
  %v1165 = vmin.f32 %v1161, 20.0
  %v1166 = vmin.f32 %v1162, 20.0
  %v1167 = vmul.f32 %v1163, 1.442695
  %v1168 = vpow.pop %v1167
  %v1169 = vmul.f32 %v1164, 1.442695
  %v1170 = vpow.pop %v1169
  %v1171 = vmul.f32 %v1165, 1.442695
  %v1172 = vpow.pop %v1171
  %v1173 = vmul.f32 %v1166, 1.442695
  %v1174 = vpow.pop %v1173
  %v1175 = vadd.f32 %v1168, 2.0
  %v1176 = vadd.f32 %v1170, 2.0
  %v1177 = vadd.f32 %v1172, 2.0
  %v1178 = vadd.f32 %v1174, 2.0
  %v1179 = vmul.f32 %v1168, %v1175
  %v1180 = vmul.f32 %v1170, %v1176
  %v1181 = vmul.f32 %v1172, %v1177
  %v1182 = vmul.f32 %v1174, %v1178
  %v1183 = vmul.f32 %v1159, %v1179
  %v1184 = vmul.f32 %v1160, %v1180
  %v1185 = vmul.f32 %v1161, %v1181
  %v1186 = vmul.f32 %v1162, %v1182
  %v1187 = vadd.f32 %v1179, 2.0
  %v1188 = vadd.f32 %v1180, 2.0
  %v1189 = vadd.f32 %v1181, 2.0
  %v1190 = vadd.f32 %v1182, 2.0
  %v1191 = vrcp.pop %v1187
  %v1192 = vrcp.pop %v1188
  %v1193 = vrcp.pop %v1189
  %v1194 = vrcp.pop %v1190
  %v1195 = vmul.f32 %v1183, %v1191
  %v1196 = vmul.f32 %v1184, %v1192
  %v1197 = vmul.f32 %v1185, %v1193
  %v1198 = vmul.f32 %v1186, %v1194
  %v1199 = vld [vmem:[%s5] sm:$0x3]
  %v1201 = vsel %vm77, %v1199, 0
  %1203 = vmatprep.subr.bf16.mxu0 0
  %1204 = vmatpush1.bf16.msra.mxu0 0
  %1205 = vmatprep.subr.bf16.mxu0 0
  %1206 = vmatpush1.bf16.msra.mxu0 0
  %1207 = vmatprep.subr.bf16.mxu0 0
  %1208 = vmatpush1.bf16.msra.mxu0 0
  %1209 = vmatprep.subr.bf16.mxu0 0
  %1210 = vmatpush1.bf16.msra.mxu0 0
  %1211 = vmatprep.subr.bf16.mxu0 0
  %1212 = vmatpush1.bf16.msra.mxu0 0
  %1213 = vmatprep.subr.bf16.mxu0 0
  %1214 = vmatpush1.bf16.msra.mxu0 0
  %1215 = vmatprep.subr.bf16.mxu0 0
  %1216 = vmatpush1.bf16.msra.mxu0 0
  %1217 = vmatprep.subr.bf16.mxu0 0
  %1218 = vmatpush1.bf16.msra.mxu0 %v1201
  %1219 = vmatprep.subr.bf16.mxu0 0
  %1220 = vmatpush2.bf16.msra.mxu0 0
  %1221 = vmatprep.subr.bf16.mxu0 0
  %1222 = vmatpush2.bf16.msra.mxu0 0
  %1223 = vmatprep.subr.bf16.mxu0 0
  %1224 = vmatpush2.bf16.msra.mxu0 0
  %1225 = vmatprep.subr.bf16.mxu0 0
  %1226 = vmatpush2.bf16.msra.mxu0 0
  %1227 = vmatprep.subr.bf16.mxu0 0
  %1228 = vmatpush2.bf16.msra.mxu0 0
  %1229 = vmatprep.subr.bf16.mxu0 0
  %1230 = vmatpush2.bf16.msra.mxu0 0
  %1231 = vmatprep.subr.bf16.mxu0 0
  %1232 = vmatpush2.bf16.msra.mxu0 0
  %1233 = vmatprep.subr.bf16.mxu0 0
  %1234 = vmatpush2.bf16.msra.mxu0 0
  %1235 = vmatprep.mubr.bf16.mxu0 0
  %1236 = vmatmul.mubr.bf16.gmra.mxu0 %v72
  %v1237 = vpop.f32.mrf.mxu0
  %v1238 = vadd.f32 0.0, %v1237
  %v1239 = vpop.f32.mrf.mxu0
  %v1240 = vpop.f32.mrf.mxu0
  %v1241 = vadd.f32 0.0, %v1240
  %v1242 = vpop.f32.mrf.mxu0
  %1243 = vmatprep.mubr.bf16.mxu0 0
  %1244 = vmatmul.mubr.bf16.gmra.mxu0 %v75
  %v1245 = vpop.f32.mrf.mxu0
  %v1246 = vadd.f32 0.0, %v1245
  %v1247 = vpop.f32.mrf.mxu0
  %v1248 = vpop.f32.mrf.mxu0
  %v1249 = vadd.f32 0.0, %v1248
  %v1250 = vpop.f32.mrf.mxu0
  %1251 = vdwg.mxu0
  %v1252 = vadd.f32 %v1195, %v1238
  %v1253 = vadd.f32 %v1196, %v1241
  %v1254 = vadd.f32 %v1197, %v1246
  %v1255 = vadd.f32 %v1198, %v1249
  %v1256 = vlaneseq
  %v1257 = vshrl.u32 %v1256, 7
  %v1258 = vsub.s32 0, %v1257
  %v1259 = vrot.slane %v43, %v1258
  %v1260 = vadd.f32 %v1252, %v1259
  %v1261 = vadd.f32 %v1253, %v1259
  %v1262 = vadd.f32 %v1254, %v1259
  %v1263 = vadd.f32 %v1255, %v1259
  %1264 = vst.msk [vmem:[%s9] sm:$0xff] %vm275, %v1260
  %1265 = vst.msk [vmem:[%s9 + $0x8] sm:$0xff] %vm275, %v1261
  %1266 = vst.msk [vmem:[%s9 + $0x10] sm:$0xff] %vm275, %v1262
  %1267 = vst.msk [vmem:[%s9 + $0x18] sm:$0xff] %vm275, %v1263
  // Predicated region
  $region38: #{tpu_custom_call.1} parent=0 // pred_check
    _
  $region39: #{tpu_custom_call.1} parent=0 // pred_check_branch
    %1269 = sbr.rel (0) target = $region41
  $region40: #{tpu_custom_call.1} parent=0 // pred_region
    _
  $region41: #{tpu_custom_call.1} parent=0 // pred_fallthru
    _
  // Predicated region
  $region42: #{tpu_custom_call.1} parent=0 // pred_check
    _
  $region43: #{tpu_custom_call.1} parent=0 // pred_check_branch
    %1271 = sbr.rel (0) target = $region45
  $region44: #{tpu_custom_call.1} parent=0 // pred_region
    _
  $region45: #{tpu_custom_call.1} parent=0 // pred_fallthru
    _

</llo_original>
